<compile_context>
chip_gen: v7x
topology: tpu7x:2x2x1
jax: 0.10.0
libtpu: 0.0.40
codegen_flags: <defaults>
</compile_context>

<pallas_src>
import jax
import jax.numpy as jnp
from jax.experimental import pallas as pl
from jax.experimental.pallas import tpu as pltpu


# ----------------------------------------------------------------------------
# Pallas kernel: serial GRU recurrence + fused relu/Linear epilogue, per batch element.
# ----------------------------------------------------------------------------
def _make_tgcn_kernel(T, N, Hd):
    def kernel(gz_ref,     # (T*N, Hd)  pre-activations for z-gate, rows ordered (t, n)
               gr_ref,     # (T*N, Hd)  pre-activations for r-gate
               gh_ref,     # (T*N, Hd)  pre-activations for h-gate
               whzr_ref,   # (Hd, 2*Hd) H-half of the z|r gate linears
               whh_ref,    # (Hd, Hd)   H-half of the h gate linear
               wo_ref,     # (Hd, Oc)   output linear weight
               bo_ref,     # (1, Oc)    output linear bias
               o_ref,      # (T*N, Oc)  output slab for this batch element
               h_scr):     # VMEM (T*N, Hd) all hidden states for this batch element
        Whzr = whzr_ref[...]
        Whh = whh_ref[...]

        H = jnp.zeros((N, Hd), jnp.float32)
        # Serial recurrence: only the two H-dependent dots remain on the critical path.
        # T is small & static -> fully-unrolled Python loop (switch to lax.fori_loop carrying H
        # with pl.ds(t*N, N) indexing once T grows).
        for t in range(T):
            r0 = t * N
            HZR = jnp.dot(H, Whzr, preferred_element_type=jnp.float32)          # (N, 2*Hd)
            Z = jax.nn.sigmoid(gz_ref[pl.ds(r0, N), :] + HZR[:, :Hd])
            R = jax.nn.sigmoid(gr_ref[pl.ds(r0, N), :] + HZR[:, Hd:])
            H_tilde = jnp.tanh(
                gh_ref[pl.ds(r0, N), :]
                + jnp.dot(H * R, Whh, preferred_element_type=jnp.float32))
            H = Z * H + (1.0 - Z) * H_tilde
            h_scr[pl.ds(r0, N), :] = H

        # Fused epilogue: Linear(relu(H_t)) for every timestep in one matmul + one store.
        H_all = jnp.maximum(h_scr[...], 0.0)                                     # (T*N, Hd)
        o_ref[...] = (jnp.dot(H_all, wo_ref[...], preferred_element_type=jnp.float32)
                      + bo_ref[...]).astype(o_ref.dtype)

    return kernel


# ----------------------------------------------------------------------------
# Glue: dense normalized adjacency (matches PyG gcn_norm with self-loops).
# Sparse scatter done in plain JAX (no clean Pallas equivalent for edge_index scatter).
# ----------------------------------------------------------------------------
def build_normalized_adjacency(edge_index, edge_weight, num_nodes):
    src = edge_index[0]
    dst = edge_index[1]
    a = jnp.zeros((num_nodes, num_nodes), jnp.float32).at[dst, src].add(edge_weight)
    # synthetic graph below has no self-loops, so add_remaining_self_loops == + I
    a = a + jnp.eye(num_nodes, dtype=jnp.float32)
    deg = a.sum(axis=1)
    d = jnp.where(deg > 0.0, jax.lax.rsqrt(deg), 0.0)
    return d[:, None] * a * d[None, :]


# ----------------------------------------------------------------------------
# Parameter fusion (exact algebra in real arithmetic).
# ----------------------------------------------------------------------------
def _fuse_params(params):
    """Fold each GCNConv weight/bias into the conv-half of its gate Linear."""
    Hd = params["wz"].shape[1]
    hi = jax.lax.Precision.HIGHEST

    def halves(w):                     # (2*Hd, Hd) -> conv-half, H-half
        return w[:Hd], w[Hd:]

    wlz_c, wlz_h = halves(params["wlz"])
    wlr_c, wlr_h = halves(params["wlr"])
    wlh_c, wlh_h = halves(params["wlh"])

    wx = jnp.concatenate(
        [jnp.dot(params["wz"], wlz_c, precision=hi),
         jnp.dot(params["wr"], wlr_c, precision=hi),
         jnp.dot(params["wh"], wlh_c, precision=hi)], axis=1)                 # (Fin, 3*Hd)
    bx = jnp.concatenate(
        [jnp.dot(params["bz"], wlz_c, precision=hi) + params["blz"],
         jnp.dot(params["br"], wlr_c, precision=hi) + params["blr"],
         jnp.dot(params["bh"], wlh_c, precision=hi) + params["blh"]], axis=1)  # (1, 3*Hd)
    whzr = jnp.concatenate([wlz_h, wlr_h], axis=1)                             # (Hd, 2*Hd)
    whh = wlh_h                                                                # (Hd, Hd)
    return wx, bx, whzr, whh


# ----------------------------------------------------------------------------
# Wrapper: hoisted H-independent matmuls + pallas_call over the batch grid.
# ----------------------------------------------------------------------------
@jax.jit
def batched_tgcn_forward(x, a_hat, params):
    # x: (B, N, Fin, T)  ->  returns (B, T, N, out_channels)
    B, N, Fin, T = x.shape
    Hd = params["wz"].shape[1]
    Oc = params["wo"].shape[1]
    hi = jax.lax.Precision.HIGHEST

    wx, bx, whzr, whh = _fuse_params(params)

    # --- Hoisted, H-independent work (one wide matmul each; handled by XLA) -------------
    # Graph aggregation for every (b, t): A (N, N) @ X' (N, B*Fin*T), batch/time/features
    # folded into the lane axis (A is NOT block-diagonalized).
    x_nodes = jnp.transpose(x, (1, 0, 2, 3)).reshape(N, B * Fin * T).astype(jnp.float32)
    ax = jnp.dot(a_hat.astype(jnp.float32), x_nodes, precision=hi)            # (N, B*Fin*T)
    ax = jnp.transpose(ax.reshape(N, B, Fin, T), (1, 3, 0, 2))                # (B, T, N, Fin)
    ax = ax.reshape(B, T * N, Fin)
    # Fused GCN -> gate projection for all gates & timesteps at once.
    g = jnp.einsum("rnf,fh->rnh", ax, wx, precision=hi) + bx                  # (B, T*N, 3*Hd)
    gz = g[..., :Hd]
    gr = g[..., Hd:2 * Hd]
    gh = g[..., 2 * Hd:]

    # --- Pallas call: serial recurrence per batch element --------------------------------
    kernel = _make_tgcn_kernel(T, N, Hd)
    g_spec = pl.BlockSpec((None, T * N, Hd), lambda b: (b, 0, 0))

    def w_spec(shape):
        # Same block index every grid step -> weights stay resident in VMEM.
        return pl.BlockSpec(shape, lambda b: (0,) * len(shape))

    flops = 2 * B * T * N * Hd * (3 * Hd) + 2 * B * T * N * Hd * Oc
    transcendentals = 3 * B * T * N * Hd
    bytes_accessed = 4 * (3 * B * T * N * Hd + B * T * N * Oc
                          + Hd * 2 * Hd + Hd * Hd + Hd * Oc + Oc)

    out = pl.pallas_call(
        kernel,
        out_shape=jax.ShapeDtypeStruct((B, T * N, Oc), jnp.float32),
        grid=(B,),
        in_specs=[g_spec, g_spec, g_spec,
                  w_spec((Hd, 2 * Hd)), w_spec((Hd, Hd)),
                  w_spec((Hd, Oc)), w_spec((1, Oc))],
        out_specs=pl.BlockSpec((None, T * N, Oc), lambda b: (b, 0, 0)),
        scratch_shapes=[pltpu.VMEM((T * N, Hd), jnp.float32)],
        compiler_params=pltpu.CompilerParams(
            dimension_semantics=("parallel",),          # v7x: shard batch over both TCs
            vmem_limit_bytes=32 * 1024 * 1024),
        cost_estimate=pl.CostEstimate(
            flops=flops, transcendentals=transcendentals,
            bytes_accessed=bytes_accessed),
    )(gz, gr, gh, whzr, whh, params["wo"], params["bo"])

    return out.reshape(B, T, N, Oc)                                            # (B, T, N, Oc)


# ----------------------------------------------------------------------------
# Pure-JAX reference (mirrors the PyTorch module semantics, un-fused) for verification.
# ----------------------------------------------------------------------------
def reference_forward(x, a_hat, params):
    B, N, Fin, T = x.shape
    Hd = params["wz"].shape[1]
    H = jnp.zeros((B, N, Hd), jnp.float32)

    def gcn(X, W, b):
        return jnp.einsum("nm,bmh->bnh", a_hat, X @ W) + b

    outs = []
    for t in range(T):
        X = x[..., t].astype(jnp.float32)
        Z = jax.nn.sigmoid(
            jnp.concatenate([gcn(X, params["wz"], params["bz"]), H], -1) @ params["wlz"]
            + params["blz"])
        R = jax.nn.sigmoid(
            jnp.concatenate([gcn(X, params["wr"], params["br"]), H], -1) @ params["wlr"]
            + params["blr"])
        H_tilde = jnp.tanh(
            jnp.concatenate([gcn(X, params["wh"], params["bh"]), H * R], -1) @ params["wlh"]
            + params["blh"])
        H = Z * H + (1.0 - Z) * H_tilde
        out_t = jnp.maximum(H, 0.0) @ params["wo"] + params["bo"]
        outs.append(out_t[:, None])
    return jnp.concatenate(outs, axis=1)                                       # (B, T, N, Oc)


# ----------------------------------------------------------------------------
# Deterministic parameter init (shapes from the module's __init__).
# ----------------------------------------------------------------------------
def make_params(key, in_channels, hidden_dim, out_channels):
    ks = jax.random.split(key, 16)
    n = lambda k, s: (0.1 * jax.random.normal(k, s)).astype(jnp.float32)
    return {
        # GCNConv weights (stored as (in, out); torch stores (out, in))
        "wz": n(ks[0], (in_channels, hidden_dim)), "bz": n(ks[1], (1, hidden_dim)),
        "wr": n(ks[2], (in_channels, hidden_dim)), "br": n(ks[3], (1, hidden_dim)),
        "wh": n(ks[4], (in_channels, hidden_dim)), "bh": n(ks[5], (1, hidden_dim)),
        # gate linears on concat([conv, H])
        "wlz": n(ks[6], (2 * hidden_dim, hidden_dim)), "blz": n(ks[7], (1, hidden_dim)),
        "wlr": n(ks[8], (2 * hidden_dim, hidden_dim)), "blr": n(ks[9], (1, hidden_dim)),
        "wlh": n(ks[10], (2 * hidden_dim, hidden_dim)), "blh": n(ks[11], (1, hidden_dim)),
        # output linear
        "wo": n(ks[12], (hidden_dim, out_channels)), "bo": n(ks[13], (1, out_channels)),
    }


if __name__ == "__main__":
    B, N, Fin, T = 2, 16, 4, 8
    Hd, Oc = 32, 2

    key = jax.random.PRNGKey(0)
    kx, kw, kp = jax.random.split(key, 3)

    # deterministic inputs
    x = jax.random.normal(kx, (B, N, Fin, T), dtype=jnp.float32)

    # deterministic ring graph (both directions), no self-loops
    src = jnp.concatenate([jnp.arange(N), (jnp.arange(N) + 1) % N])
    dst = jnp.concatenate([(jnp.arange(N) + 1) % N, jnp.arange(N)])
    edge_index = jnp.stack([src, dst], axis=0).astype(jnp.int32)
    edge_weight = jax.random.uniform(kw, (2 * N,), minval=0.5, maxval=1.5,
                                     dtype=jnp.float32)

    params = make_params(kp, Fin, Hd, Oc)
    a_hat = build_normalized_adjacency(edge_index, edge_weight, N)

    out = batched_tgcn_forward(x, a_hat, params)
    out = jax.block_until_ready(out)

    ref = jax.block_until_ready(reference_forward(x, a_hat, params))

    assert out.shape == (B, T, N, Oc), out.shape
    assert jnp.allclose(out, ref, rtol=1e-3, atol=5e-3), (
        float(jnp.max(jnp.abs(out - ref))))

    print("KERNEL_OK")
</pallas_src>

<mosaic_0001>
module attributes {stable_mosaic.version = 11 : i64} {
  func.func @kernel(%arg0: i32, %arg1: memref<1x128x32xf32, #tpu.memory_space<vmem>>, %arg2: memref<1x128x32xf32, #tpu.memory_space<vmem>>, %arg3: memref<1x128x32xf32, #tpu.memory_space<vmem>>, %arg4: memref<32x64xf32, #tpu.memory_space<vmem>>, %arg5: memref<32x32xf32, #tpu.memory_space<vmem>>, %arg6: memref<32x2xf32, #tpu.memory_space<vmem>>, %arg7: memref<1x2xf32, #tpu.memory_space<vmem>>, %arg8: memref<1x128x2xf32, #tpu.memory_space<vmem>>, %arg9: memref<128x32xf32, #tpu.memory_space<vmem>>) attributes {dimension_semantics = [#tpu.dimension_semantics<parallel>], iteration_bounds = array<i64: 2>, scalar_prefetch = 0 : i64, scratch_operands = 1 : i64, tpu.core_type = #tpu.core_type<tc>, window_params = [{transform_indices = @transform_0, window_bounds = array<i64: 1, 128, 32>}, {transform_indices = @transform_1, window_bounds = array<i64: 1, 128, 32>}, {transform_indices = @transform_2, window_bounds = array<i64: 1, 128, 32>}, {pipeline_mode = #tpu.pipeline_mode<synchronous>, transform_indices = @transform_3, window_bounds = array<i64: 32, 64>}, {pipeline_mode = #tpu.pipeline_mode<synchronous>, transform_indices = @transform_4, window_bounds = array<i64: 32, 32>}, {pipeline_mode = #tpu.pipeline_mode<synchronous>, transform_indices = @transform_5, window_bounds = array<i64: 32, 2>}, {pipeline_mode = #tpu.pipeline_mode<synchronous>, transform_indices = @transform_6, window_bounds = array<i64: 1, 2>}, {transform_indices = @transform_7, window_bounds = array<i64: 1, 128, 2>}]} {
    %c0 = arith.constant 0 : index
    %c0_0 = arith.constant 0 : index
    %0 = vector.load %arg4[%c0, %c0_0] : memref<32x64xf32, #tpu.memory_space<vmem>>, vector<32x64xf32>
    %c0_1 = arith.constant 0 : index
    %c0_2 = arith.constant 0 : index
    %1 = vector.load %arg5[%c0_1, %c0_2] : memref<32x32xf32, #tpu.memory_space<vmem>>, vector<32x32xf32>
    %cst = arith.constant 0.000000e+00 : f32
    %2 = vector.broadcast %cst : f32 to vector<16x32xf32>
    %cst_3 = arith.constant dense<0.000000e+00> : vector<16x64xf32>
    %3 = tpu.matmul %2, %0, %cst_3 {dimension_numbers = #tpu.dot_dimension_numbers<[1], [0], [0], [1], [0, 0, 1, 1], [], []>} : vector<16x32xf32>, vector<32x64xf32>, vector<16x64xf32> -> vector<16x64xf32>
    %c0_4 = arith.constant 0 : index
    %c0_5 = arith.constant 0 : index
    %c0_6 = arith.constant 0 : index
    %4 = vector.load %arg1[%c0_4, %c0_5, %c0_6] : memref<1x128x32xf32, #tpu.memory_space<vmem>>, vector<1x16x32xf32>
    %5 = vector.shape_cast %4 : vector<1x16x32xf32> to vector<16x32xf32>
    %6 = vector.extract_strided_slice %3 {offsets = [0, 0], sizes = [16, 32], strides = [1, 1]} : vector<16x64xf32> to vector<16x32xf32>
    %7 = arith.addf %5, %6 : vector<16x32xf32>
    %8 = arith.negf %7 : vector<16x32xf32>
    %9 = math.exp %8 : vector<16x32xf32>
    %cst_7 = arith.constant 1.000000e+00 : f32
    %10 = vector.broadcast %cst_7 : f32 to vector<16x32xf32>
    %11 = arith.addf %10, %9 : vector<16x32xf32>
    %12 = arith.divf %10, %11 : vector<16x32xf32>
    %c0_8 = arith.constant 0 : index
    %c0_9 = arith.constant 0 : index
    %c0_10 = arith.constant 0 : index
    %13 = vector.load %arg2[%c0_8, %c0_9, %c0_10] : memref<1x128x32xf32, #tpu.memory_space<vmem>>, vector<1x16x32xf32>
    %14 = vector.shape_cast %13 : vector<1x16x32xf32> to vector<16x32xf32>
    %15 = vector.extract_strided_slice %3 {offsets = [0, 32], sizes = [16, 32], strides = [1, 1]} : vector<16x64xf32> to vector<16x32xf32>
    %16 = arith.addf %14, %15 : vector<16x32xf32>
    %17 = arith.negf %16 : vector<16x32xf32>
    %18 = math.exp %17 : vector<16x32xf32>
    %cst_11 = arith.constant 1.000000e+00 : f32
    %19 = vector.broadcast %cst_11 : f32 to vector<16x32xf32>
    %20 = arith.addf %19, %18 : vector<16x32xf32>
    %21 = arith.divf %19, %20 : vector<16x32xf32>
    %c0_12 = arith.constant 0 : index
    %c0_13 = arith.constant 0 : index
    %c0_14 = arith.constant 0 : index
    %22 = vector.load %arg3[%c0_12, %c0_13, %c0_14] : memref<1x128x32xf32, #tpu.memory_space<vmem>>, vector<1x16x32xf32>
    %23 = vector.shape_cast %22 : vector<1x16x32xf32> to vector<16x32xf32>
    %24 = arith.mulf %2, %21 : vector<16x32xf32>
    %cst_15 = arith.constant dense<0.000000e+00> : vector<16x32xf32>
    %25 = tpu.matmul %24, %1, %cst_15 {dimension_numbers = #tpu.dot_dimension_numbers<[1], [0], [0], [1], [0, 0, 1, 1], [], []>} : vector<16x32xf32>, vector<32x32xf32>, vector<16x32xf32> -> vector<16x32xf32>
    %26 = arith.addf %23, %25 : vector<16x32xf32>
    %27 = math.tanh %26 : vector<16x32xf32>
    %28 = arith.mulf %12, %2 : vector<16x32xf32>
    %cst_16 = arith.constant 1.000000e+00 : f32
    %29 = vector.broadcast %cst_16 : f32 to vector<16x32xf32>
    %30 = arith.subf %29, %12 : vector<16x32xf32>
    %31 = arith.mulf %30, %27 : vector<16x32xf32>
    %32 = arith.addf %28, %31 : vector<16x32xf32>
    %c0_17 = arith.constant 0 : index
    %c0_18 = arith.constant 0 : index
    %33 = vector.load %arg9[%c0_17, %c0_18] : memref<128x32xf32, #tpu.memory_space<vmem>>, vector<16x32xf32>
    tpu.vector_store %arg9[%c0_17, %c0_18], %32 {strides = array<i32>} : memref<128x32xf32, #tpu.memory_space<vmem>>, vector<16x32xf32>,
    %cst_19 = arith.constant dense<0.000000e+00> : vector<16x64xf32>
    %34 = tpu.matmul %32, %0, %cst_19 {dimension_numbers = #tpu.dot_dimension_numbers<[1], [0], [0], [1], [0, 0, 1, 1], [], []>} : vector<16x32xf32>, vector<32x64xf32>, vector<16x64xf32> -> vector<16x64xf32>
    %c0_20 = arith.constant 0 : index
    %c16 = arith.constant 16 : index
    %c0_21 = arith.constant 0 : index
    %35 = vector.load %arg1[%c0_20, %c16, %c0_21] : memref<1x128x32xf32, #tpu.memory_space<vmem>>, vector<1x16x32xf32>
    %36 = vector.shape_cast %35 : vector<1x16x32xf32> to vector<16x32xf32>
    %37 = vector.extract_strided_slice %34 {offsets = [0, 0], sizes = [16, 32], strides = [1, 1]} : vector<16x64xf32> to vector<16x32xf32>
    %38 = arith.addf %36, %37 : vector<16x32xf32>
    %39 = arith.negf %38 : vector<16x32xf32>
    %40 = math.exp %39 : vector<16x32xf32>
    %cst_22 = arith.constant 1.000000e+00 : f32
    %41 = vector.broadcast %cst_22 : f32 to vector<16x32xf32>
    %42 = arith.addf %41, %40 : vector<16x32xf32>
    %43 = arith.divf %41, %42 : vector<16x32xf32>
    %c0_23 = arith.constant 0 : index
    %c16_24 = arith.constant 16 : index
    %c0_25 = arith.constant 0 : index
    %44 = vector.load %arg2[%c0_23, %c16_24, %c0_25] : memref<1x128x32xf32, #tpu.memory_space<vmem>>, vector<1x16x32xf32>
    %45 = vector.shape_cast %44 : vector<1x16x32xf32> to vector<16x32xf32>
    %46 = vector.extract_strided_slice %34 {offsets = [0, 32], sizes = [16, 32], strides = [1, 1]} : vector<16x64xf32> to vector<16x32xf32>
    %47 = arith.addf %45, %46 : vector<16x32xf32>
    %48 = arith.negf %47 : vector<16x32xf32>
    %49 = math.exp %48 : vector<16x32xf32>
    %cst_26 = arith.constant 1.000000e+00 : f32
    %50 = vector.broadcast %cst_26 : f32 to vector<16x32xf32>
    %51 = arith.addf %50, %49 : vector<16x32xf32>
    %52 = arith.divf %50, %51 : vector<16x32xf32>
    %c0_27 = arith.constant 0 : index
    %c16_28 = arith.constant 16 : index
    %c0_29 = arith.constant 0 : index
    %53 = vector.load %arg3[%c0_27, %c16_28, %c0_29] : memref<1x128x32xf32, #tpu.memory_space<vmem>>, vector<1x16x32xf32>
    %54 = vector.shape_cast %53 : vector<1x16x32xf32> to vector<16x32xf32>
    %55 = arith.mulf %32, %52 : vector<16x32xf32>
    %cst_30 = arith.constant dense<0.000000e+00> : vector<16x32xf32>
    %56 = tpu.matmul %55, %1, %cst_30 {dimension_numbers = #tpu.dot_dimension_numbers<[1], [0], [0], [1], [0, 0, 1, 1], [], []>} : vector<16x32xf32>, vector<32x32xf32>, vector<16x32xf32> -> vector<16x32xf32>
    %57 = arith.addf %54, %56 : vector<16x32xf32>
    %58 = math.tanh %57 : vector<16x32xf32>
    %59 = arith.mulf %43, %32 : vector<16x32xf32>
    %cst_31 = arith.constant 1.000000e+00 : f32
    %60 = vector.broadcast %cst_31 : f32 to vector<16x32xf32>
    %61 = arith.subf %60, %43 : vector<16x32xf32>
    %62 = arith.mulf %61, %58 : vector<16x32xf32>
    %63 = arith.addf %59, %62 : vector<16x32xf32>
    %c16_32 = arith.constant 16 : index
    %c0_33 = arith.constant 0 : index
    %64 = vector.load %arg9[%c16_32, %c0_33] : memref<128x32xf32, #tpu.memory_space<vmem>>, vector<16x32xf32>
    tpu.vector_store %arg9[%c16_32, %c0_33], %63 {strides = array<i32>} : memref<128x32xf32, #tpu.memory_space<vmem>>, vector<16x32xf32>,
    %cst_34 = arith.constant dense<0.000000e+00> : vector<16x64xf32>
    %65 = tpu.matmul %63, %0, %cst_34 {dimension_numbers = #tpu.dot_dimension_numbers<[1], [0], [0], [1], [0, 0, 1, 1], [], []>} : vector<16x32xf32>, vector<32x64xf32>, vector<16x64xf32> -> vector<16x64xf32>
    %c0_35 = arith.constant 0 : index
    %c32 = arith.constant 32 : index
    %c0_36 = arith.constant 0 : index
    %66 = vector.load %arg1[%c0_35, %c32, %c0_36] : memref<1x128x32xf32, #tpu.memory_space<vmem>>, vector<1x16x32xf32>
    %67 = vector.shape_cast %66 : vector<1x16x32xf32> to vector<16x32xf32>
    %68 = vector.extract_strided_slice %65 {offsets = [0, 0], sizes = [16, 32], strides = [1, 1]} : vector<16x64xf32> to vector<16x32xf32>
    %69 = arith.addf %67, %68 : vector<16x32xf32>
    %70 = arith.negf %69 : vector<16x32xf32>
    %71 = math.exp %70 : vector<16x32xf32>
    %cst_37 = arith.constant 1.000000e+00 : f32
    %72 = vector.broadcast %cst_37 : f32 to vector<16x32xf32>
    %73 = arith.addf %72, %71 : vector<16x32xf32>
    %74 = arith.divf %72, %73 : vector<16x32xf32>
    %c0_38 = arith.constant 0 : index
    %c32_39 = arith.constant 32 : index
    %c0_40 = arith.constant 0 : index
    %75 = vector.load %arg2[%c0_38, %c32_39, %c0_40] : memref<1x128x32xf32, #tpu.memory_space<vmem>>, vector<1x16x32xf32>
    %76 = vector.shape_cast %75 : vector<1x16x32xf32> to vector<16x32xf32>
    %77 = vector.extract_strided_slice %65 {offsets = [0, 32], sizes = [16, 32], strides = [1, 1]} : vector<16x64xf32> to vector<16x32xf32>
    %78 = arith.addf %76, %77 : vector<16x32xf32>
    %79 = arith.negf %78 : vector<16x32xf32>
    %80 = math.exp %79 : vector<16x32xf32>
    %cst_41 = arith.constant 1.000000e+00 : f32
    %81 = vector.broadcast %cst_41 : f32 to vector<16x32xf32>
    %82 = arith.addf %81, %80 : vector<16x32xf32>
    %83 = arith.divf %81, %82 : vector<16x32xf32>
    %c0_42 = arith.constant 0 : index
    %c32_43 = arith.constant 32 : index
    %c0_44 = arith.constant 0 : index
    %84 = vector.load %arg3[%c0_42, %c32_43, %c0_44] : memref<1x128x32xf32, #tpu.memory_space<vmem>>, vector<1x16x32xf32>
    %85 = vector.shape_cast %84 : vector<1x16x32xf32> to vector<16x32xf32>
    %86 = arith.mulf %63, %83 : vector<16x32xf32>
    %cst_45 = arith.constant dense<0.000000e+00> : vector<16x32xf32>
    %87 = tpu.matmul %86, %1, %cst_45 {dimension_numbers = #tpu.dot_dimension_numbers<[1], [0], [0], [1], [0, 0, 1, 1], [], []>} : vector<16x32xf32>, vector<32x32xf32>, vector<16x32xf32> -> vector<16x32xf32>
    %88 = arith.addf %85, %87 : vector<16x32xf32>
    %89 = math.tanh %88 : vector<16x32xf32>
    %90 = arith.mulf %74, %63 : vector<16x32xf32>
    %cst_46 = arith.constant 1.000000e+00 : f32
    %91 = vector.broadcast %cst_46 : f32 to vector<16x32xf32>
    %92 = arith.subf %91, %74 : vector<16x32xf32>
    %93 = arith.mulf %92, %89 : vector<16x32xf32>
    %94 = arith.addf %90, %93 : vector<16x32xf32>
    %c32_47 = arith.constant 32 : index
    %c0_48 = arith.constant 0 : index
    %95 = vector.load %arg9[%c32_47, %c0_48] : memref<128x32xf32, #tpu.memory_space<vmem>>, vector<16x32xf32>
    tpu.vector_store %arg9[%c32_47, %c0_48], %94 {strides = array<i32>} : memref<128x32xf32, #tpu.memory_space<vmem>>, vector<16x32xf32>,
    %cst_49 = arith.constant dense<0.000000e+00> : vector<16x64xf32>
    %96 = tpu.matmul %94, %0, %cst_49 {dimension_numbers = #tpu.dot_dimension_numbers<[1], [0], [0], [1], [0, 0, 1, 1], [], []>} : vector<16x32xf32>, vector<32x64xf32>, vector<16x64xf32> -> vector<16x64xf32>
    %c0_50 = arith.constant 0 : index
    %c48 = arith.constant 48 : index
    %c0_51 = arith.constant 0 : index
    %97 = vector.load %arg1[%c0_50, %c48, %c0_51] : memref<1x128x32xf32, #tpu.memory_space<vmem>>, vector<1x16x32xf32>
    %98 = vector.shape_cast %97 : vector<1x16x32xf32> to vector<16x32xf32>
    %99 = vector.extract_strided_slice %96 {offsets = [0, 0], sizes = [16, 32], strides = [1, 1]} : vector<16x64xf32> to vector<16x32xf32>
    %100 = arith.addf %98, %99 : vector<16x32xf32>
    %101 = arith.negf %100 : vector<16x32xf32>
    %102 = math.exp %101 : vector<16x32xf32>
    %cst_52 = arith.constant 1.000000e+00 : f32
    %103 = vector.broadcast %cst_52 : f32 to vector<16x32xf32>
    %104 = arith.addf %103, %102 : vector<16x32xf32>
    %105 = arith.divf %103, %104 : vector<16x32xf32>
    %c0_53 = arith.constant 0 : index
    %c48_54 = arith.constant 48 : index
    %c0_55 = arith.constant 0 : index
    %106 = vector.load %arg2[%c0_53, %c48_54, %c0_55] : memref<1x128x32xf32, #tpu.memory_space<vmem>>, vector<1x16x32xf32>
    %107 = vector.shape_cast %106 : vector<1x16x32xf32> to vector<16x32xf32>
    %108 = vector.extract_strided_slice %96 {offsets = [0, 32], sizes = [16, 32], strides = [1, 1]} : vector<16x64xf32> to vector<16x32xf32>
    %109 = arith.addf %107, %108 : vector<16x32xf32>
    %110 = arith.negf %109 : vector<16x32xf32>
    %111 = math.exp %110 : vector<16x32xf32>
    %cst_56 = arith.constant 1.000000e+00 : f32
    %112 = vector.broadcast %cst_56 : f32 to vector<16x32xf32>
    %113 = arith.addf %112, %111 : vector<16x32xf32>
    %114 = arith.divf %112, %113 : vector<16x32xf32>
    %c0_57 = arith.constant 0 : index
    %c48_58 = arith.constant 48 : index
    %c0_59 = arith.constant 0 : index
    %115 = vector.load %arg3[%c0_57, %c48_58, %c0_59] : memref<1x128x32xf32, #tpu.memory_space<vmem>>, vector<1x16x32xf32>
    %116 = vector.shape_cast %115 : vector<1x16x32xf32> to vector<16x32xf32>
    %117 = arith.mulf %94, %114 : vector<16x32xf32>
    %cst_60 = arith.constant dense<0.000000e+00> : vector<16x32xf32>
    %118 = tpu.matmul %117, %1, %cst_60 {dimension_numbers = #tpu.dot_dimension_numbers<[1], [0], [0], [1], [0, 0, 1, 1], [], []>} : vector<16x32xf32>, vector<32x32xf32>, vector<16x32xf32> -> vector<16x32xf32>
    %119 = arith.addf %116, %118 : vector<16x32xf32>
    %120 = math.tanh %119 : vector<16x32xf32>
    %121 = arith.mulf %105, %94 : vector<16x32xf32>
    %cst_61 = arith.constant 1.000000e+00 : f32
    %122 = vector.broadcast %cst_61 : f32 to vector<16x32xf32>
    %123 = arith.subf %122, %105 : vector<16x32xf32>
    %124 = arith.mulf %123, %120 : vector<16x32xf32>
    %125 = arith.addf %121, %124 : vector<16x32xf32>
    %c48_62 = arith.constant 48 : index
    %c0_63 = arith.constant 0 : index
    %126 = vector.load %arg9[%c48_62, %c0_63] : memref<128x32xf32, #tpu.memory_space<vmem>>, vector<16x32xf32>
    tpu.vector_store %arg9[%c48_62, %c0_63], %125 {strides = array<i32>} : memref<128x32xf32, #tpu.memory_space<vmem>>, vector<16x32xf32>,
    %cst_64 = arith.constant dense<0.000000e+00> : vector<16x64xf32>
    %127 = tpu.matmul %125, %0, %cst_64 {dimension_numbers = #tpu.dot_dimension_numbers<[1], [0], [0], [1], [0, 0, 1, 1], [], []>} : vector<16x32xf32>, vector<32x64xf32>, vector<16x64xf32> -> vector<16x64xf32>
    %c0_65 = arith.constant 0 : index
    %c64 = arith.constant 64 : index
    %c0_66 = arith.constant 0 : index
    %128 = vector.load %arg1[%c0_65, %c64, %c0_66] : memref<1x128x32xf32, #tpu.memory_space<vmem>>, vector<1x16x32xf32>
    %129 = vector.shape_cast %128 : vector<1x16x32xf32> to vector<16x32xf32>
    %130 = vector.extract_strided_slice %127 {offsets = [0, 0], sizes = [16, 32], strides = [1, 1]} : vector<16x64xf32> to vector<16x32xf32>
    %131 = arith.addf %129, %130 : vector<16x32xf32>
    %132 = arith.negf %131 : vector<16x32xf32>
    %133 = math.exp %132 : vector<16x32xf32>
    %cst_67 = arith.constant 1.000000e+00 : f32
    %134 = vector.broadcast %cst_67 : f32 to vector<16x32xf32>
    %135 = arith.addf %134, %133 : vector<16x32xf32>
    %136 = arith.divf %134, %135 : vector<16x32xf32>
    %c0_68 = arith.constant 0 : index
    %c64_69 = arith.constant 64 : index
    %c0_70 = arith.constant 0 : index
    %137 = vector.load %arg2[%c0_68, %c64_69, %c0_70] : memref<1x128x32xf32, #tpu.memory_space<vmem>>, vector<1x16x32xf32>
    %138 = vector.shape_cast %137 : vector<1x16x32xf32> to vector<16x32xf32>
    %139 = vector.extract_strided_slice %127 {offsets = [0, 32], sizes = [16, 32], strides = [1, 1]} : vector<16x64xf32> to vector<16x32xf32>
    %140 = arith.addf %138, %139 : vector<16x32xf32>
    %141 = arith.negf %140 : vector<16x32xf32>
    %142 = math.exp %141 : vector<16x32xf32>
    %cst_71 = arith.constant 1.000000e+00 : f32
    %143 = vector.broadcast %cst_71 : f32 to vector<16x32xf32>
    %144 = arith.addf %143, %142 : vector<16x32xf32>
    %145 = arith.divf %143, %144 : vector<16x32xf32>
    %c0_72 = arith.constant 0 : index
    %c64_73 = arith.constant 64 : index
    %c0_74 = arith.constant 0 : index
    %146 = vector.load %arg3[%c0_72, %c64_73, %c0_74] : memref<1x128x32xf32, #tpu.memory_space<vmem>>, vector<1x16x32xf32>
    %147 = vector.shape_cast %146 : vector<1x16x32xf32> to vector<16x32xf32>
    %148 = arith.mulf %125, %145 : vector<16x32xf32>
    %cst_75 = arith.constant dense<0.000000e+00> : vector<16x32xf32>
    %149 = tpu.matmul %148, %1, %cst_75 {dimension_numbers = #tpu.dot_dimension_numbers<[1], [0], [0], [1], [0, 0, 1, 1], [], []>} : vector<16x32xf32>, vector<32x32xf32>, vector<16x32xf32> -> vector<16x32xf32>
    %150 = arith.addf %147, %149 : vector<16x32xf32>
    %151 = math.tanh %150 : vector<16x32xf32>
    %152 = arith.mulf %136, %125 : vector<16x32xf32>
    %cst_76 = arith.constant 1.000000e+00 : f32
    %153 = vector.broadcast %cst_76 : f32 to vector<16x32xf32>
    %154 = arith.subf %153, %136 : vector<16x32xf32>
    %155 = arith.mulf %154, %151 : vector<16x32xf32>
    %156 = arith.addf %152, %155 : vector<16x32xf32>
    %c64_77 = arith.constant 64 : index
    %c0_78 = arith.constant 0 : index
    %157 = vector.load %arg9[%c64_77, %c0_78] : memref<128x32xf32, #tpu.memory_space<vmem>>, vector<16x32xf32>
    tpu.vector_store %arg9[%c64_77, %c0_78], %156 {strides = array<i32>} : memref<128x32xf32, #tpu.memory_space<vmem>>, vector<16x32xf32>,
    %cst_79 = arith.constant dense<0.000000e+00> : vector<16x64xf32>
    %158 = tpu.matmul %156, %0, %cst_79 {dimension_numbers = #tpu.dot_dimension_numbers<[1], [0], [0], [1], [0, 0, 1, 1], [], []>} : vector<16x32xf32>, vector<32x64xf32>, vector<16x64xf32> -> vector<16x64xf32>
    %c0_80 = arith.constant 0 : index
    %c80 = arith.constant 80 : index
    %c0_81 = arith.constant 0 : index
    %159 = vector.load %arg1[%c0_80, %c80, %c0_81] : memref<1x128x32xf32, #tpu.memory_space<vmem>>, vector<1x16x32xf32>
    %160 = vector.shape_cast %159 : vector<1x16x32xf32> to vector<16x32xf32>
    %161 = vector.extract_strided_slice %158 {offsets = [0, 0], sizes = [16, 32], strides = [1, 1]} : vector<16x64xf32> to vector<16x32xf32>
    %162 = arith.addf %160, %161 : vector<16x32xf32>
    %163 = arith.negf %162 : vector<16x32xf32>
    %164 = math.exp %163 : vector<16x32xf32>
    %cst_82 = arith.constant 1.000000e+00 : f32
    %165 = vector.broadcast %cst_82 : f32 to vector<16x32xf32>
    %166 = arith.addf %165, %164 : vector<16x32xf32>
    %167 = arith.divf %165, %166 : vector<16x32xf32>
    %c0_83 = arith.constant 0 : index
    %c80_84 = arith.constant 80 : index
    %c0_85 = arith.constant 0 : index
    %168 = vector.load %arg2[%c0_83, %c80_84, %c0_85] : memref<1x128x32xf32, #tpu.memory_space<vmem>>, vector<1x16x32xf32>
    %169 = vector.shape_cast %168 : vector<1x16x32xf32> to vector<16x32xf32>
    %170 = vector.extract_strided_slice %158 {offsets = [0, 32], sizes = [16, 32], strides = [1, 1]} : vector<16x64xf32> to vector<16x32xf32>
    %171 = arith.addf %169, %170 : vector<16x32xf32>
    %172 = arith.negf %171 : vector<16x32xf32>
    %173 = math.exp %172 : vector<16x32xf32>
    %cst_86 = arith.constant 1.000000e+00 : f32
    %174 = vector.broadcast %cst_86 : f32 to vector<16x32xf32>
    %175 = arith.addf %174, %173 : vector<16x32xf32>
    %176 = arith.divf %174, %175 : vector<16x32xf32>
    %c0_87 = arith.constant 0 : index
    %c80_88 = arith.constant 80 : index
    %c0_89 = arith.constant 0 : index
    %177 = vector.load %arg3[%c0_87, %c80_88, %c0_89] : memref<1x128x32xf32, #tpu.memory_space<vmem>>, vector<1x16x32xf32>
    %178 = vector.shape_cast %177 : vector<1x16x32xf32> to vector<16x32xf32>
    %179 = arith.mulf %156, %176 : vector<16x32xf32>
    %cst_90 = arith.constant dense<0.000000e+00> : vector<16x32xf32>
    %180 = tpu.matmul %179, %1, %cst_90 {dimension_numbers = #tpu.dot_dimension_numbers<[1], [0], [0], [1], [0, 0, 1, 1], [], []>} : vector<16x32xf32>, vector<32x32xf32>, vector<16x32xf32> -> vector<16x32xf32>
    %181 = arith.addf %178, %180 : vector<16x32xf32>
    %182 = math.tanh %181 : vector<16x32xf32>
    %183 = arith.mulf %167, %156 : vector<16x32xf32>
    %cst_91 = arith.constant 1.000000e+00 : f32
    %184 = vector.broadcast %cst_91 : f32 to vector<16x32xf32>
    %185 = arith.subf %184, %167 : vector<16x32xf32>
    %186 = arith.mulf %185, %182 : vector<16x32xf32>
    %187 = arith.addf %183, %186 : vector<16x32xf32>
    %c80_92 = arith.constant 80 : index
    %c0_93 = arith.constant 0 : index
    %188 = vector.load %arg9[%c80_92, %c0_93] : memref<128x32xf32, #tpu.memory_space<vmem>>, vector<16x32xf32>
    tpu.vector_store %arg9[%c80_92, %c0_93], %187 {strides = array<i32>} : memref<128x32xf32, #tpu.memory_space<vmem>>, vector<16x32xf32>,
    %cst_94 = arith.constant dense<0.000000e+00> : vector<16x64xf32>
    %189 = tpu.matmul %187, %0, %cst_94 {dimension_numbers = #tpu.dot_dimension_numbers<[1], [0], [0], [1], [0, 0, 1, 1], [], []>} : vector<16x32xf32>, vector<32x64xf32>, vector<16x64xf32> -> vector<16x64xf32>
    %c0_95 = arith.constant 0 : index
    %c96 = arith.constant 96 : index
    %c0_96 = arith.constant 0 : index
    %190 = vector.load %arg1[%c0_95, %c96, %c0_96] : memref<1x128x32xf32, #tpu.memory_space<vmem>>, vector<1x16x32xf32>
    %191 = vector.shape_cast %190 : vector<1x16x32xf32> to vector<16x32xf32>
    %192 = vector.extract_strided_slice %189 {offsets = [0, 0], sizes = [16, 32], strides = [1, 1]} : vector<16x64xf32> to vector<16x32xf32>
    %193 = arith.addf %191, %192 : vector<16x32xf32>
    %194 = arith.negf %193 : vector<16x32xf32>
    %195 = math.exp %194 : vector<16x32xf32>
    %cst_97 = arith.constant 1.000000e+00 : f32
    %196 = vector.broadcast %cst_97 : f32 to vector<16x32xf32>
    %197 = arith.addf %196, %195 : vector<16x32xf32>
    %198 = arith.divf %196, %197 : vector<16x32xf32>
    %c0_98 = arith.constant 0 : index
    %c96_99 = arith.constant 96 : index
    %c0_100 = arith.constant 0 : index
    %199 = vector.load %arg2[%c0_98, %c96_99, %c0_100] : memref<1x128x32xf32, #tpu.memory_space<vmem>>, vector<1x16x32xf32>
    %200 = vector.shape_cast %199 : vector<1x16x32xf32> to vector<16x32xf32>
    %201 = vector.extract_strided_slice %189 {offsets = [0, 32], sizes = [16, 32], strides = [1, 1]} : vector<16x64xf32> to vector<16x32xf32>
    %202 = arith.addf %200, %201 : vector<16x32xf32>
    %203 = arith.negf %202 : vector<16x32xf32>
    %204 = math.exp %203 : vector<16x32xf32>
    %cst_101 = arith.constant 1.000000e+00 : f32
    %205 = vector.broadcast %cst_101 : f32 to vector<16x32xf32>
    %206 = arith.addf %205, %204 : vector<16x32xf32>
    %207 = arith.divf %205, %206 : vector<16x32xf32>
    %c0_102 = arith.constant 0 : index
    %c96_103 = arith.constant 96 : index
    %c0_104 = arith.constant 0 : index
    %208 = vector.load %arg3[%c0_102, %c96_103, %c0_104] : memref<1x128x32xf32, #tpu.memory_space<vmem>>, vector<1x16x32xf32>
    %209 = vector.shape_cast %208 : vector<1x16x32xf32> to vector<16x32xf32>
    %210 = arith.mulf %187, %207 : vector<16x32xf32>
    %cst_105 = arith.constant dense<0.000000e+00> : vector<16x32xf32>
    %211 = tpu.matmul %210, %1, %cst_105 {dimension_numbers = #tpu.dot_dimension_numbers<[1], [0], [0], [1], [0, 0, 1, 1], [], []>} : vector<16x32xf32>, vector<32x32xf32>, vector<16x32xf32> -> vector<16x32xf32>
    %212 = arith.addf %209, %211 : vector<16x32xf32>
    %213 = math.tanh %212 : vector<16x32xf32>
    %214 = arith.mulf %198, %187 : vector<16x32xf32>
    %cst_106 = arith.constant 1.000000e+00 : f32
    %215 = vector.broadcast %cst_106 : f32 to vector<16x32xf32>
    %216 = arith.subf %215, %198 : vector<16x32xf32>
    %217 = arith.mulf %216, %213 : vector<16x32xf32>
    %218 = arith.addf %214, %217 : vector<16x32xf32>
    %c96_107 = arith.constant 96 : index
    %c0_108 = arith.constant 0 : index
    %219 = vector.load %arg9[%c96_107, %c0_108] : memref<128x32xf32, #tpu.memory_space<vmem>>, vector<16x32xf32>
    tpu.vector_store %arg9[%c96_107, %c0_108], %218 {strides = array<i32>} : memref<128x32xf32, #tpu.memory_space<vmem>>, vector<16x32xf32>,
    %cst_109 = arith.constant dense<0.000000e+00> : vector<16x64xf32>
    %220 = tpu.matmul %218, %0, %cst_109 {dimension_numbers = #tpu.dot_dimension_numbers<[1], [0], [0], [1], [0, 0, 1, 1], [], []>} : vector<16x32xf32>, vector<32x64xf32>, vector<16x64xf32> -> vector<16x64xf32>
    %c0_110 = arith.constant 0 : index
    %c112 = arith.constant 112 : index
    %c0_111 = arith.constant 0 : index
    %221 = vector.load %arg1[%c0_110, %c112, %c0_111] : memref<1x128x32xf32, #tpu.memory_space<vmem>>, vector<1x16x32xf32>
    %222 = vector.shape_cast %221 : vector<1x16x32xf32> to vector<16x32xf32>
    %223 = vector.extract_strided_slice %220 {offsets = [0, 0], sizes = [16, 32], strides = [1, 1]} : vector<16x64xf32> to vector<16x32xf32>
    %224 = arith.addf %222, %223 : vector<16x32xf32>
    %225 = arith.negf %224 : vector<16x32xf32>
    %226 = math.exp %225 : vector<16x32xf32>
    %cst_112 = arith.constant 1.000000e+00 : f32
    %227 = vector.broadcast %cst_112 : f32 to vector<16x32xf32>
    %228 = arith.addf %227, %226 : vector<16x32xf32>
    %229 = arith.divf %227, %228 : vector<16x32xf32>
    %c0_113 = arith.constant 0 : index
    %c112_114 = arith.constant 112 : index
    %c0_115 = arith.constant 0 : index
    %230 = vector.load %arg2[%c0_113, %c112_114, %c0_115] : memref<1x128x32xf32, #tpu.memory_space<vmem>>, vector<1x16x32xf32>
    %231 = vector.shape_cast %230 : vector<1x16x32xf32> to vector<16x32xf32>
    %232 = vector.extract_strided_slice %220 {offsets = [0, 32], sizes = [16, 32], strides = [1, 1]} : vector<16x64xf32> to vector<16x32xf32>
    %233 = arith.addf %231, %232 : vector<16x32xf32>
    %234 = arith.negf %233 : vector<16x32xf32>
    %235 = math.exp %234 : vector<16x32xf32>
    %cst_116 = arith.constant 1.000000e+00 : f32
    %236 = vector.broadcast %cst_116 : f32 to vector<16x32xf32>
    %237 = arith.addf %236, %235 : vector<16x32xf32>
    %238 = arith.divf %236, %237 : vector<16x32xf32>
    %c0_117 = arith.constant 0 : index
    %c112_118 = arith.constant 112 : index
    %c0_119 = arith.constant 0 : index
    %239 = vector.load %arg3[%c0_117, %c112_118, %c0_119] : memref<1x128x32xf32, #tpu.memory_space<vmem>>, vector<1x16x32xf32>
    %240 = vector.shape_cast %239 : vector<1x16x32xf32> to vector<16x32xf32>
    %241 = arith.mulf %218, %238 : vector<16x32xf32>
    %cst_120 = arith.constant dense<0.000000e+00> : vector<16x32xf32>
    %242 = tpu.matmul %241, %1, %cst_120 {dimension_numbers = #tpu.dot_dimension_numbers<[1], [0], [0], [1], [0, 0, 1, 1], [], []>} : vector<16x32xf32>, vector<32x32xf32>, vector<16x32xf32> -> vector<16x32xf32>
    %243 = arith.addf %240, %242 : vector<16x32xf32>
    %244 = math.tanh %243 : vector<16x32xf32>
    %245 = arith.mulf %229, %218 : vector<16x32xf32>
    %cst_121 = arith.constant 1.000000e+00 : f32
    %246 = vector.broadcast %cst_121 : f32 to vector<16x32xf32>
    %247 = arith.subf %246, %229 : vector<16x32xf32>
    %248 = arith.mulf %247, %244 : vector<16x32xf32>
    %249 = arith.addf %245, %248 : vector<16x32xf32>
    %c112_122 = arith.constant 112 : index
    %c0_123 = arith.constant 0 : index
    %250 = vector.load %arg9[%c112_122, %c0_123] : memref<128x32xf32, #tpu.memory_space<vmem>>, vector<16x32xf32>
    tpu.vector_store %arg9[%c112_122, %c0_123], %249 {strides = array<i32>} : memref<128x32xf32, #tpu.memory_space<vmem>>, vector<16x32xf32>,
    %c0_124 = arith.constant 0 : index
    %c0_125 = arith.constant 0 : index
    %251 = vector.load %arg9[%c0_124, %c0_125] : memref<128x32xf32, #tpu.memory_space<vmem>>, vector<128x32xf32>
    %cst_126 = arith.constant 0.000000e+00 : f32
    %252 = vector.broadcast %cst_126 : f32 to vector<128x32xf32>
    %253 = arith.maximumf %251, %252 : vector<128x32xf32>
    %c0_127 = arith.constant 0 : index
    %c0_128 = arith.constant 0 : index
    %254 = vector.load %arg6[%c0_127, %c0_128] : memref<32x2xf32, #tpu.memory_space<vmem>>, vector<32x2xf32>
    %cst_129 = arith.constant dense<0.000000e+00> : vector<128x2xf32>
    %255 = tpu.matmul %253, %254, %cst_129 {dimension_numbers = #tpu.dot_dimension_numbers<[1], [0], [0], [1], [0, 0, 1, 1], [], []>} : vector<128x32xf32>, vector<32x2xf32>, vector<128x2xf32> -> vector<128x2xf32>
    %c0_130 = arith.constant 0 : index
    %c0_131 = arith.constant 0 : index
    %256 = vector.load %arg7[%c0_130, %c0_131] : memref<1x2xf32, #tpu.memory_space<vmem>>, vector<1x2xf32>
    %257 = vector.broadcast %256 : vector<1x2xf32> to vector<128x2xf32>
    %258 = arith.addf %255, %257 : vector<128x2xf32>
    %c0_132 = arith.constant 0 : index
    %c0_133 = arith.constant 0 : index
    %c0_134 = arith.constant 0 : index
    %259 = vector.load %arg8[%c0_132, %c0_133, %c0_134] : memref<1x128x2xf32, #tpu.memory_space<vmem>>, vector<1x128x2xf32>
    %260 = vector.shape_cast %259 : vector<1x128x2xf32> to vector<128x2xf32>
    %261 = vector.shape_cast %258 : vector<128x2xf32> to vector<1x128x2xf32>
    tpu.vector_store %arg8[%c0_132, %c0_133, %c0_134], %261 {strides = array<i32>} : memref<1x128x2xf32, #tpu.memory_space<vmem>>, vector<1x128x2xf32>,
    return
  }
  func.func @transform_0(%arg0: i32) -> (i32, i32, i32) {
    %c0_i32 = arith.constant 0 : i32
    %c0_i32_0 = arith.constant 0 : i32
    %c0_i32_1 = arith.constant 0 : i32
    return %arg0, %c0_i32, %c0_i32_0 : i32, i32, i32
  }
  func.func @transform_1(%arg0: i32) -> (i32, i32, i32) {
    %c0_i32 = arith.constant 0 : i32
    %c0_i32_0 = arith.constant 0 : i32
    %c0_i32_1 = arith.constant 0 : i32
    return %arg0, %c0_i32, %c0_i32_0 : i32, i32, i32
  }
  func.func @transform_2(%arg0: i32) -> (i32, i32, i32) {
    %c0_i32 = arith.constant 0 : i32
    %c0_i32_0 = arith.constant 0 : i32
    %c0_i32_1 = arith.constant 0 : i32
    return %arg0, %c0_i32, %c0_i32_0 : i32, i32, i32
  }
  func.func @transform_3(%arg0: i32) -> (i32, i32) {
    %c0_i32 = arith.constant 0 : i32
    %c0_i32_0 = arith.constant 0 : i32
    %c0_i32_1 = arith.constant 0 : i32
    return %c0_i32, %c0_i32_0 : i32, i32
  }
  func.func @transform_4(%arg0: i32) -> (i32, i32) {
    %c0_i32 = arith.constant 0 : i32
    %c0_i32_0 = arith.constant 0 : i32
    %c0_i32_1 = arith.constant 0 : i32
    return %c0_i32, %c0_i32_0 : i32, i32
  }
  func.func @transform_5(%arg0: i32) -> (i32, i32) {
    %c0_i32 = arith.constant 0 : i32
    %c0_i32_0 = arith.constant 0 : i32
    %c0_i32_1 = arith.constant 0 : i32
    return %c0_i32, %c0_i32_0 : i32, i32
  }
  func.func @transform_6(%arg0: i32) -> (i32, i32) {
    %c0_i32 = arith.constant 0 : i32
    %c0_i32_0 = arith.constant 0 : i32
    %c0_i32_1 = arith.constant 0 : i32
    return %c0_i32, %c0_i32_0 : i32, i32
  }
  func.func @transform_7(%arg0: i32) -> (i32, i32, i32) {
    %c0_i32 = arith.constant 0 : i32
    %c0_i32_0 = arith.constant 0 : i32
    %c0_i32_1 = arith.constant 0 : i32
    return %arg0, %c0_i32, %c0_i32_0 : i32, i32, i32
  }
}

</mosaic_0001>

<llo_original>
// kernel: batched_tgcn_forward.1
$region0: #{batched_tgcn_forward.1}
  #allocation0 [shape = 'u32[]', space=smem, size = 0x4, offset = 0x4, fixed_abs, tag = 'smem constant byte address 0x4 - core index']
  #allocation1 [shape = 'u32[144,128]{1,0:T(1,128)}', space=vmem, size = 0x12000, scoped, tag = 'internal scratch']
  #allocation2 [shape = 'f32[128,32]{1,0:T(8,128)}', space=vmem, size = 0x10000, scoped, tag = 'scratch operand']
  %s0 = inlined_call_operand.vmem [shape: f32[2,128,32], index: 0, kind: input, shape index: {}]
  %s1 = inlined_call_operand.vmem [shape: f32[2,128,32], index: 1, kind: input, shape index: {}]
  %s2 = inlined_call_operand.vmem [shape: f32[2,128,32], index: 2, kind: input, shape index: {}]
  %s3 = inlined_call_operand.vmem [shape: f32[32,64], index: 3, kind: input, shape index: {}]
  %s4 = inlined_call_operand.vmem [shape: f32[32,32], index: 4, kind: input, shape index: {}]
  %s5 = inlined_call_operand.vmem [shape: f32[32,2], index: 5, kind: input, shape index: {}]
  %s6 = inlined_call_operand.vmem [shape: f32[1,2], index: 6, kind: input, shape index: {}]
  %s7 = inlined_call_operand.vmem [shape: f32[2,128,2], index: 7, kind: output, shape index: {}]
  %s8 = sld [smem:[#allocation0]]
  $region61: #{batched_tgcn_forward.1} parent=0
    _
  %s10 = ssub.s32 1, %s8
  %s11 = scalar_select 0, %s10, %s8
  loop: start=0, step=1, limit=4
  $region2: #{batched_tgcn_forward.1} parent=0 // loop_pre_header
    _
  $region3: #{batched_tgcn_forward.1} parent=0 // loop_header
    %s13 = sphi 0, %s17
    %p14 = scmp.ge.s32.totalorder %s13, 4
    %s23 = sphi 0, %s25
    %s26 = sphi 0, %s23
    %s27 = sphi 0, %s26
    %s43 = sphi 0, %s27
    %s49 = sphi 0, %s51
    %s52 = sphi 0, %s49
    %s53 = sphi 0, %s52
    %s69 = sphi 0, %s53
    %s75 = sphi 0, %s77
    %s78 = sphi 0, %s75
    %s79 = sphi 0, %s78
    %s95 = sphi 0, %s79
    %s99 = sphi 0, %s99
    %s101 = sphi 0, %s99
    %s102 = sphi 0, %s101
    %s116 = sphi 0, %s102
    %s120 = sphi 0, %s120
    %s122 = sphi 0, %s120
    %s123 = sphi 0, %s122
    %s137 = sphi 0, %s123
    %s141 = sphi 0, %s141
    %s143 = sphi 0, %s141
    %s144 = sphi 0, %s143
    %s158 = sphi 0, %s144
    %s162 = sphi 0, %s162
    %s164 = sphi 0, %s162
    %s165 = sphi 0, %s164
    %s179 = sphi 0, %s165
    %s185 = sphi 0, %s187
    %s188 = sphi 0, %s185
    %s189 = sphi 0, %s188
    %s205 = sphi 0, %s189
  $region4: #{batched_tgcn_forward.1} parent=0 // loop_header_branch
    %16 = sbr.rel (%p14) target = $region8
  $region5: #{batched_tgcn_forward.1} parent=0 // loop_body
    %s18 = ssub.s32 %s13, 1
    %s19 = ssub.s32 %s13, 2
    %s20 = sadd.s32 %s13, 1
    %s21 = ssub.s32 %s13, %s20
    %p22 = scmp.eq.s32.totalorder %s21, 0
    %s24 = sadd.s32 %s23, 1
    %s25 = scalar_select %p22, %s23, %s24
    %p28 = pneg %p22
    %p29 = scmp.eq.s32.totalorder %s13, 1
    %p30 = por %p28, %p29
    %p31 = scmp.ne.s32.totalorder %s23, %s26
    %p32 = scmp.eq.s32.totalorder %s13, 0
    %p33 = por %p31, %p32
    %p34 = scmp.ne.s32.totalorder %s23, %s26
    %p35 = scmp.eq.s32.totalorder %s18, 1
    %p36 = por %p34, %p35
    %p37 = scmp.ne.s32.totalorder %s26, %s27
    %p38 = scmp.eq.s32.totalorder %s18, 0
    %p39 = por %p37, %p38
    %p40 = scmp.ne.s32.totalorder %s26, %s27
    %p41 = scmp.eq.s32.totalorder %s19, 1
    %p42 = por %p40, %p41
    %p44 = scmp.ne.s32.totalorder %s27, %s43
    %p45 = scmp.eq.s32.totalorder %s19, 0
    %p46 = por %p44, %p45
    %s47 = ssub.s32 %s13, %s20
    %p48 = scmp.eq.s32.totalorder %s47, 0
    %s50 = sadd.s32 %s49, 1
    %s51 = scalar_select %p48, %s49, %s50
    %p54 = pneg %p48
    %p55 = scmp.eq.s32.totalorder %s13, 1
    %p56 = por %p54, %p55
    %p57 = scmp.ne.s32.totalorder %s49, %s52
    %p58 = scmp.eq.s32.totalorder %s13, 0
    %p59 = por %p57, %p58
    %p60 = scmp.ne.s32.totalorder %s49, %s52
    %p61 = scmp.eq.s32.totalorder %s18, 1
    %p62 = por %p60, %p61
    %p63 = scmp.ne.s32.totalorder %s52, %s53
    %p64 = scmp.eq.s32.totalorder %s18, 0
    %p65 = por %p63, %p64
    %p66 = scmp.ne.s32.totalorder %s52, %s53
    %p67 = scmp.eq.s32.totalorder %s19, 1
    %p68 = por %p66, %p67
    %p70 = scmp.ne.s32.totalorder %s53, %s69
    %p71 = scmp.eq.s32.totalorder %s19, 0
    %p72 = por %p70, %p71
    %s73 = ssub.s32 %s13, %s20
    %p74 = scmp.eq.s32.totalorder %s73, 0
    %s76 = sadd.s32 %s75, 1
    %s77 = scalar_select %p74, %s75, %s76
    %p80 = pneg %p74
    %p81 = scmp.eq.s32.totalorder %s13, 1
    %p82 = por %p80, %p81
    %p83 = scmp.ne.s32.totalorder %s75, %s78
    %p84 = scmp.eq.s32.totalorder %s13, 0
    %p85 = por %p83, %p84
    %p86 = scmp.ne.s32.totalorder %s75, %s78
    %p87 = scmp.eq.s32.totalorder %s18, 1
    %p88 = por %p86, %p87
    %p89 = scmp.ne.s32.totalorder %s78, %s79
    %p90 = scmp.eq.s32.totalorder %s18, 0
    %p91 = por %p89, %p90
    %p92 = scmp.ne.s32.totalorder %s78, %s79
    %p93 = scmp.eq.s32.totalorder %s19, 1
    %p94 = por %p92, %p93
    %p96 = scmp.ne.s32.totalorder %s79, %s95
    %p97 = scmp.eq.s32.totalorder %s19, 0
    %p98 = por %p96, %p97
    %s100 = sadd.s32 %s99, 1
    %p103 = scmp.eq.s32.totalorder %s13, 1
    %p104 = scmp.ne.s32.totalorder %s99, %s101
    %p105 = scmp.eq.s32.totalorder %s13, 0
    %p106 = por %p104, %p105
    %p107 = scmp.ne.s32.totalorder %s99, %s101
    %p108 = scmp.eq.s32.totalorder %s18, 1
    %p109 = por %p107, %p108
    %p110 = scmp.ne.s32.totalorder %s101, %s102
    %p111 = scmp.eq.s32.totalorder %s18, 0
    %p112 = por %p110, %p111
    %p113 = scmp.ne.s32.totalorder %s101, %s102
    %p114 = scmp.eq.s32.totalorder %s19, 1
    %p115 = por %p113, %p114
    %p117 = scmp.ne.s32.totalorder %s102, %s116
    %p118 = scmp.eq.s32.totalorder %s19, 0
    %p119 = por %p117, %p118
    %s121 = sadd.s32 %s120, 1
    %p124 = scmp.eq.s32.totalorder %s13, 1
    %p125 = scmp.ne.s32.totalorder %s120, %s122
    %p126 = scmp.eq.s32.totalorder %s13, 0
    %p127 = por %p125, %p126
    %p128 = scmp.ne.s32.totalorder %s120, %s122
    %p129 = scmp.eq.s32.totalorder %s18, 1
    %p130 = por %p128, %p129
    %p131 = scmp.ne.s32.totalorder %s122, %s123
    %p132 = scmp.eq.s32.totalorder %s18, 0
    %p133 = por %p131, %p132
    %p134 = scmp.ne.s32.totalorder %s122, %s123
    %p135 = scmp.eq.s32.totalorder %s19, 1
    %p136 = por %p134, %p135
    %p138 = scmp.ne.s32.totalorder %s123, %s137
    %p139 = scmp.eq.s32.totalorder %s19, 0
    %p140 = por %p138, %p139
    %s142 = sadd.s32 %s141, 1
    %p145 = scmp.eq.s32.totalorder %s13, 1
    %p146 = scmp.ne.s32.totalorder %s141, %s143
    %p147 = scmp.eq.s32.totalorder %s13, 0
    %p148 = por %p146, %p147
    %p149 = scmp.ne.s32.totalorder %s141, %s143
    %p150 = scmp.eq.s32.totalorder %s18, 1
    %p151 = por %p149, %p150
    %p152 = scmp.ne.s32.totalorder %s143, %s144
    %p153 = scmp.eq.s32.totalorder %s18, 0
    %p154 = por %p152, %p153
    %p155 = scmp.ne.s32.totalorder %s143, %s144
    %p156 = scmp.eq.s32.totalorder %s19, 1
    %p157 = por %p155, %p156
    %p159 = scmp.ne.s32.totalorder %s144, %s158
    %p160 = scmp.eq.s32.totalorder %s19, 0
    %p161 = por %p159, %p160
    %s163 = sadd.s32 %s162, 1
    %p166 = scmp.eq.s32.totalorder %s13, 1
    %p167 = scmp.ne.s32.totalorder %s162, %s164
    %p168 = scmp.eq.s32.totalorder %s13, 0
    %p169 = por %p167, %p168
    %p170 = scmp.ne.s32.totalorder %s162, %s164
    %p171 = scmp.eq.s32.totalorder %s18, 1
    %p172 = por %p170, %p171
    %p173 = scmp.ne.s32.totalorder %s164, %s165
    %p174 = scmp.eq.s32.totalorder %s18, 0
    %p175 = por %p173, %p174
    %p176 = scmp.ne.s32.totalorder %s164, %s165
    %p177 = scmp.eq.s32.totalorder %s19, 1
    %p178 = por %p176, %p177
    %p180 = scmp.ne.s32.totalorder %s165, %s179
    %p181 = scmp.eq.s32.totalorder %s19, 0
    %p182 = por %p180, %p181
    %s183 = ssub.s32 %s13, %s20
    %p184 = scmp.eq.s32.totalorder %s183, 0
    %s186 = sadd.s32 %s185, 1
    %s187 = scalar_select %p184, %s185, %s186
    %p190 = pneg %p184
    %p191 = scmp.eq.s32.totalorder %s13, 1
    %p192 = por %p190, %p191
    %p193 = scmp.ne.s32.totalorder %s185, %s188
    %p194 = scmp.eq.s32.totalorder %s13, 0
    %p195 = por %p193, %p194
    %p196 = scmp.ne.s32.totalorder %s185, %s188
    %p197 = scmp.eq.s32.totalorder %s18, 1
    %p198 = por %p196, %p197
    %p199 = scmp.ne.s32.totalorder %s188, %s189
    %p200 = scmp.eq.s32.totalorder %s18, 0
    %p201 = por %p199, %p200
    %p202 = scmp.ne.s32.totalorder %s188, %s189
    %p203 = scmp.eq.s32.totalorder %s19, 1
    %p204 = por %p202, %p203
    %p206 = scmp.ne.s32.totalorder %s189, %s205
    %p207 = scmp.eq.s32.totalorder %s19, 0
    %p208 = por %p206, %p207
    %p209 = scmp.le.s32.totalorder 1, %s13
    %p210 = scmp.lt.s32.totalorder %s13, 3
    %p211 = pnand %p209, %p210
    %p212 = pneg %p211
    // Predicated region
    $region9: #{batched_tgcn_forward.1} parent=5 // pred_check
      _
    $region10: #{batched_tgcn_forward.1} parent=5 // pred_check_branch
      %214 = sbr.rel (%p211) target = $region12
    $region11: #{batched_tgcn_forward.1} parent=5 // pred_region
      %s215 = ssub.s32 %s13, 1
      // Predicated region
      $region13: #{batched_tgcn_forward.1} parent=11 // pred_check
        %p216 = pneg %p112
      $region14: #{batched_tgcn_forward.1} parent=11 // pred_check_branch
        %218 = sbr.rel (%p216) target = $region16
      $region15: #{batched_tgcn_forward.1} parent=11 // pred_region
        _
      $region16: #{batched_tgcn_forward.1} parent=11 // pred_fallthru
        _
      // Predicated region
      $region17: #{batched_tgcn_forward.1} parent=11 // pred_check
        %p219 = pneg %p133
      $region18: #{batched_tgcn_forward.1} parent=11 // pred_check_branch
        %221 = sbr.rel (%p219) target = $region20
      $region19: #{batched_tgcn_forward.1} parent=11 // pred_region
        _
      $region20: #{batched_tgcn_forward.1} parent=11 // pred_fallthru
        _
      // Predicated region
      $region21: #{batched_tgcn_forward.1} parent=11 // pred_check
        %p222 = pneg %p154
      $region22: #{batched_tgcn_forward.1} parent=11 // pred_check_branch
        %224 = sbr.rel (%p222) target = $region24
      $region23: #{batched_tgcn_forward.1} parent=11 // pred_region
        _
      $region24: #{batched_tgcn_forward.1} parent=11 // pred_fallthru
        _
      // Predicated region
      $region25: #{batched_tgcn_forward.1} parent=11 // pred_check
        %p225 = pneg %p175
      $region26: #{batched_tgcn_forward.1} parent=11 // pred_check_branch
        %227 = sbr.rel (%p225) target = $region28
      $region27: #{batched_tgcn_forward.1} parent=11 // pred_region
        _
      $region28: #{batched_tgcn_forward.1} parent=11 // pred_fallthru
        _
    $region12: #{batched_tgcn_forward.1} parent=5 // pred_fallthru
      _
    %p228 = scmp.lt.s32.totalorder %s13, 2
    // Predicated region
    $region29: #{batched_tgcn_forward.1} parent=5 // pred_check
      %p229 = pneg %p228
    $region30: #{batched_tgcn_forward.1} parent=5 // pred_check_branch
      %231 = sbr.rel (%p229) target = $region32
    $region31: #{batched_tgcn_forward.1} parent=5 // pred_region
      // Predicated region
      $region33: #{batched_tgcn_forward.1} parent=31 // pred_check
        %p232 = pneg %p33
      $region34: #{batched_tgcn_forward.1} parent=31 // pred_check_branch
        %234 = sbr.rel (%p232) target = $region36
      $region35: #{batched_tgcn_forward.1} parent=31 // pred_region
        %p235 = scmp.lt.s32.totalorder %s13, 1
        %s236 = scalar_select %p235, %s13, 1
        %s237 = smul.addr %s236, 16
        %s238 = smul.addr %s237, 8
        %s239 = scalar_lea.vmem %s0, %s238
      $region36: #{batched_tgcn_forward.1} parent=31 // pred_fallthru
        _
      // Predicated region
      $region37: #{batched_tgcn_forward.1} parent=31 // pred_check
        %p240 = pneg %p59
      $region38: #{batched_tgcn_forward.1} parent=31 // pred_check_branch
        %242 = sbr.rel (%p240) target = $region40
      $region39: #{batched_tgcn_forward.1} parent=31 // pred_region
        %p243 = scmp.lt.s32.totalorder %s13, 1
        %s244 = scalar_select %p243, %s13, 1
        %s245 = smul.addr %s244, 16
        %s246 = smul.addr %s245, 8
        %s247 = scalar_lea.vmem %s1, %s246
      $region40: #{batched_tgcn_forward.1} parent=31 // pred_fallthru
        _
      // Predicated region
      $region41: #{batched_tgcn_forward.1} parent=31 // pred_check
        %p248 = pneg %p85
      $region42: #{batched_tgcn_forward.1} parent=31 // pred_check_branch
        %250 = sbr.rel (%p248) target = $region44
      $region43: #{batched_tgcn_forward.1} parent=31 // pred_region
        %p251 = scmp.lt.s32.totalorder %s13, 1
        %s252 = scalar_select %p251, %s13, 1
        %s253 = smul.addr %s252, 16
        %s254 = smul.addr %s253, 8
        %s255 = scalar_lea.vmem %s2, %s254
      $region44: #{batched_tgcn_forward.1} parent=31 // pred_fallthru
        _
    $region32: #{batched_tgcn_forward.1} parent=5 // pred_fallthru
      _
    %p256 = scmp.le.s32.totalorder 1, %s13
    %p257 = scmp.lt.s32.totalorder %s13, 3
    %p258 = pnand %p256, %p257
    %p259 = pneg %p258
    // Predicated region
    $region45: #{batched_tgcn_forward.1} parent=5 // pred_check
      _
    $region46: #{batched_tgcn_forward.1} parent=5 // pred_check_branch
      %261 = sbr.rel (%p258) target = $region48
    $region47: #{batched_tgcn_forward.1} parent=5 // pred_region
      %s262 = ssub.s32 %s13, 1
      %p263 = scmp.lt.s32.totalorder %s18, 1
      %s264 = scalar_select %p263, %s18, 1
      %s265 = smul.addr %s264, 16
      %s266 = smul.addr %s265, 8
      %s267 = scalar_lea.vmem %s0, %s266
      %p268 = pneg %p39
      %p269 = pneg %p36
      %p270 = scmp.lt.s32.totalorder %s18, 1
      %s271 = scalar_select %p270, %s18, 1
      %s272 = smul.addr %s271, 16
      %s273 = smul.addr %s272, 8
      %s274 = scalar_lea.vmem %s1, %s273
      %p275 = pneg %p65
      %p276 = pneg %p62
      %p277 = scmp.lt.s32.totalorder %s18, 1
      %s278 = scalar_select %p277, %s18, 1
      %s279 = smul.addr %s278, 16
      %s280 = smul.addr %s279, 8
      %s281 = scalar_lea.vmem %s2, %s280
      %p282 = pneg %p91
      %p283 = pneg %p88
      %p284 = pneg %p112
      %p285 = pneg %p109
      %p286 = pneg %p133
      %p287 = pneg %p130
      %p288 = pneg %p154
      %p289 = pneg %p151
      %p290 = pneg %p175
      %p291 = pneg %p172
      %p292 = pneg %p201
      %p293 = pneg %p198
      %p294 = scmp.lt.s32.totalorder %s18, 1
      %s295 = scalar_select %p294, %s18, 1
      %s296 = smul.addr %s295, 16
      %s297 = smul.addr %s296, 8
      %s298 = scalar_lea.vmem %s7, %s297
      %p299 = scmp.lt.s32.totalorder %s18, 1
      %s300 = scalar_select %p299, %s18, 1
      %s301 = smul.addr %s300, 16
      %s302 = smul.addr %s301, 8
      %s303 = scalar_lea.vmem %s0, %s302
      %p304 = scmp.lt.s32.totalorder %s18, 1
      %s305 = scalar_select %p304, %s18, 1
      %s306 = smul.addr %s305, 16
      %s307 = smul.addr %s306, 8
      %s308 = scalar_lea.vmem %s1, %s307
      %p309 = scmp.lt.s32.totalorder %s18, 1
      %s310 = scalar_select %p309, %s18, 1
      %s311 = smul.addr %s310, 16
      %s312 = smul.addr %s311, 8
      %s313 = scalar_lea.vmem %s2, %s312
      %p314 = scmp.lt.s32.totalorder %s18, 1
      %s315 = scalar_select %p314, %s18, 1
      %s316 = smul.addr %s315, 16
      %s317 = smul.addr %s316, 8
      %s318 = scalar_lea.vmem %s7, %s317
      %v319 = vld [vmem:[%s3] sm:$0xff]
      %v320 = vld [vmem:[%s3 + $0x8] sm:$0xff]
      %v321 = vld [vmem:[%s3 + $0x10] sm:$0xff]
      %v322 = vld [vmem:[%s3 + $0x18] sm:$0xff]
      %v323 = vld [vmem:[%s4] sm:$0xff]
      %v324 = vld [vmem:[%s4 + $0x8] sm:$0xff]
      %v325 = vld [vmem:[%s4 + $0x10] sm:$0xff]
      %v326 = vld [vmem:[%s4 + $0x18] sm:$0xff]
      %vm327 = vcmask 261120
      %v329 = vsel %vm327, 0.0, 0
      %331 = vmatprep.subr.mxu0 0.0
      %332 = vmatpush1.msra.mxu0 %v319
      %333 = vmatprep.subr.mxu0 0.0
      %334 = vmatpush1.msra.mxu0 %v320
      %335 = vmatprep.subr.mxu0 0.0
      %336 = vmatpush1.msra.mxu0 %v321
      %337 = vmatprep.subr.mxu0 0.0
      %338 = vmatpush1.msra.mxu0 %v322
      %339 = vmatprep.subr.mxu0 0.0
      %340 = vmatpush1.msra.mxu0 0.0
      %341 = vmatprep.subr.mxu0 0.0
      %342 = vmatpush1.msra.mxu0 0.0
      %343 = vmatprep.subr.mxu0 0.0
      %344 = vmatpush1.msra.mxu0 0.0
      %345 = vmatprep.subr.mxu0 0.0
      %346 = vmatpush1.msra.mxu0 0.0
      %347 = vmatprep.subr.mxu0 0.0
      %348 = vmatpush1.msra.mxu0 0.0
      %349 = vmatprep.subr.mxu0 0.0
      %350 = vmatpush1.msra.mxu0 0.0
      %351 = vmatprep.subr.mxu0 0.0
      %352 = vmatpush1.msra.mxu0 0.0
      %353 = vmatprep.subr.mxu0 0.0
      %354 = vmatpush1.msra.mxu0 0.0
      %355 = vmatprep.subr.mxu0 0.0
      %356 = vmatpush1.msra.mxu0 0.0
      %357 = vmatprep.subr.mxu0 0.0
      %358 = vmatpush1.msra.mxu0 0.0
      %359 = vmatprep.subr.mxu0 0.0
      %360 = vmatpush1.msra.mxu0 0.0
      %361 = vmatprep.subr.mxu0 0.0
      %362 = vmatpush1.msra.mxu0 0.0
      %363 = vmatprep.subr.mxu0 0.0
      %364 = vmatpush1.msra.mxu0 0.0
      %365 = vmatprep.subr.mxu0 0.0
      %366 = vmatpush1.msra.mxu0 0.0
      %367 = vmatprep.subr.mxu0 0.0
      %368 = vmatpush1.msra.mxu0 0.0
      %369 = vmatprep.subr.mxu0 0.0
      %370 = vmatpush1.msra.mxu0 0.0
      %371 = vmatprep.subr.mxu0 0.0
      %372 = vmatpush1.msra.mxu0 0.0
      %373 = vmatprep.subr.mxu0 0.0
      %374 = vmatpush1.msra.mxu0 0.0
      %375 = vmatprep.subr.mxu0 0.0
      %376 = vmatpush1.msra.mxu0 0.0
      %377 = vmatprep.subr.mxu0 0.0
      %378 = vmatpush1.msra.mxu0 0.0
      %379 = vmatprep.subr.mxu0 0.0
      %380 = vmatpush1.msra.mxu0 0.0
      %381 = vmatprep.subr.mxu0 0.0
      %382 = vmatpush1.msra.mxu0 0.0
      %383 = vmatprep.subr.mxu0 0.0
      %384 = vmatpush1.msra.mxu0 0.0
      %385 = vmatprep.subr.mxu0 0.0
      %386 = vmatpush1.msra.mxu0 0.0
      %387 = vmatprep.subr.mxu0 0.0
      %388 = vmatpush1.msra.mxu0 0.0
      %389 = vmatprep.subr.mxu0 0.0
      %390 = vmatpush1.msra.mxu0 0.0
      %391 = vmatprep.subr.mxu0 0.0
      %392 = vmatpush1.msra.mxu0 0.0
      %393 = vmatprep.subr.mxu0 0.0
      %394 = vmatpush1.msra.mxu0 0.0
      %395 = vmatprep.mubr.f32.mxu0 0.0
      %396 = vmatmul.mubr.f32.gmra.mrb[0].mxu0 %v329
      %v397 = vpop.f32.mrb[0].mxu0
      %v398 = vadd.f32 0.0, %v397
      %v399 = vpop.f32.mrb[0].mxu0
      %400 = vmatprep.mubr.f32.mxu0 0.0
      %401 = vmatmul.mubr.f32.gmra.mrb[0].mxu0 %v329
      %v402 = vpop.f32.mrb[0].mxu0
      %v403 = vadd.f32 0.0, %v402
      %v404 = vpop.f32.mrb[0].mxu0
      %405 = vdwg.mxu0
      %v406 = vld [vmem:[%s303] sm:$0xff]
      %v407 = vld [vmem:[%s303 + $0x8] sm:$0xff]
      %v408 = vadd.f32 %v406, %v398
      %v409 = vadd.f32 %v407, %v403
      %v410 = vxor.u32 %v408, 2147483648
      %v411 = vxor.u32 %v409, 2147483648
      %v412 = vmul.f32 %v410, 1.442695
      %v413 = vpow.pop %v412
      %v414 = vmul.f32 %v411, 1.442695
      %v415 = vpow.pop %v414
      %v416 = vadd.f32 %v413, 1.0
      %v417 = vadd.f32 %v415, 1.0
      %v418 = vrcp.pop %v416
      %v419 = vmul.f32 1.0, %v418
      %v420 = vrcp.pop %v417
      %v421 = vmul.f32 1.0, %v420
      %v422 = vld [vmem:[%s308] sm:$0xff]
      %v423 = vld [vmem:[%s308 + $0x8] sm:$0xff]
      %426 = vrot.lane.b32.xlu0 %v398, 96
      %v427 = vpop.permute.xlu0 %426
      %428 = vrot.lane.b32.xlu0 %v403, 96
      %v429 = vpop.permute.xlu0 %428
      %v432 = vadd.f32 %v422, %v427
      %v433 = vadd.f32 %v423, %v429
      %v434 = vxor.u32 %v432, 2147483648
      %v435 = vxor.u32 %v433, 2147483648
      %v436 = vmul.f32 %v434, 1.442695
      %v437 = vpow.pop %v436
      %v438 = vmul.f32 %v435, 1.442695
      %v439 = vpow.pop %v438
      %v440 = vadd.f32 %v437, 1.0
      %v441 = vadd.f32 %v439, 1.0
      %v442 = vrcp.pop %v440
      %v443 = vmul.f32 1.0, %v442
      %v444 = vrcp.pop %v441
      %v445 = vmul.f32 1.0, %v444
      %v446 = vld [vmem:[%s313] sm:$0xff]
      %v447 = vld [vmem:[%s313 + $0x8] sm:$0xff]
      %v448 = vmul.f32 %v443, 0.0
      %v449 = vmul.f32 %v445, 0.0
      %v451 = vsel %vm327, %v448, 0
      %v454 = vsel %vm327, %v449, 0
      %456 = vmatprep.subr.mxu0 0.0
      %457 = vmatpush1.msra.mxu0 %v323
      %458 = vmatprep.subr.mxu0 0.0
      %459 = vmatpush1.msra.mxu0 %v324
      %460 = vmatprep.subr.mxu0 0.0
      %461 = vmatpush1.msra.mxu0 %v325
      %462 = vmatprep.subr.mxu0 0.0
      %463 = vmatpush1.msra.mxu0 %v326
      %464 = vmatprep.subr.mxu0 0.0
      %465 = vmatpush1.msra.mxu0 0.0
      %466 = vmatprep.subr.mxu0 0.0
      %467 = vmatpush1.msra.mxu0 0.0
      %468 = vmatprep.subr.mxu0 0.0
      %469 = vmatpush1.msra.mxu0 0.0
      %470 = vmatprep.subr.mxu0 0.0
      %471 = vmatpush1.msra.mxu0 0.0
      %472 = vmatprep.subr.mxu0 0.0
      %473 = vmatpush1.msra.mxu0 0.0
      %474 = vmatprep.subr.mxu0 0.0
      %475 = vmatpush1.msra.mxu0 0.0
      %476 = vmatprep.subr.mxu0 0.0
      %477 = vmatpush1.msra.mxu0 0.0
      %478 = vmatprep.subr.mxu0 0.0
      %479 = vmatpush1.msra.mxu0 0.0
      %480 = vmatprep.subr.mxu0 0.0
      %481 = vmatpush1.msra.mxu0 0.0
      %482 = vmatprep.subr.mxu0 0.0
      %483 = vmatpush1.msra.mxu0 0.0
      %484 = vmatprep.subr.mxu0 0.0
      %485 = vmatpush1.msra.mxu0 0.0
      %486 = vmatprep.subr.mxu0 0.0
      %487 = vmatpush1.msra.mxu0 0.0
      %488 = vmatprep.subr.mxu0 0.0
      %489 = vmatpush1.msra.mxu0 0.0
      %490 = vmatprep.subr.mxu0 0.0
      %491 = vmatpush1.msra.mxu0 0.0
      %492 = vmatprep.subr.mxu0 0.0
      %493 = vmatpush1.msra.mxu0 0.0
      %494 = vmatprep.subr.mxu0 0.0
      %495 = vmatpush1.msra.mxu0 0.0
      %496 = vmatprep.subr.mxu0 0.0
      %497 = vmatpush1.msra.mxu0 0.0
      %498 = vmatprep.subr.mxu0 0.0
      %499 = vmatpush1.msra.mxu0 0.0
      %500 = vmatprep.subr.mxu0 0.0
      %501 = vmatpush1.msra.mxu0 0.0
      %502 = vmatprep.subr.mxu0 0.0
      %503 = vmatpush1.msra.mxu0 0.0
      %504 = vmatprep.subr.mxu0 0.0
      %505 = vmatpush1.msra.mxu0 0.0
      %506 = vmatprep.subr.mxu0 0.0
      %507 = vmatpush1.msra.mxu0 0.0
      %508 = vmatprep.subr.mxu0 0.0
      %509 = vmatpush1.msra.mxu0 0.0
      %510 = vmatprep.subr.mxu0 0.0
      %511 = vmatpush1.msra.mxu0 0.0
      %512 = vmatprep.subr.mxu0 0.0
      %513 = vmatpush1.msra.mxu0 0.0
      %514 = vmatprep.subr.mxu0 0.0
      %515 = vmatpush1.msra.mxu0 0.0
      %516 = vmatprep.subr.mxu0 0.0
      %517 = vmatpush1.msra.mxu0 0.0
      %518 = vmatprep.subr.mxu0 0.0
      %519 = vmatpush1.msra.mxu0 0.0
      %520 = vmatprep.mubr.f32.mxu0 0.0
      %521 = vmatmul.mubr.f32.gmra.mrb[0].mxu0 %v451
      %v522 = vpop.f32.mrb[0].mxu0
      %v523 = vadd.f32 0.0, %v522
      %v524 = vpop.f32.mrb[0].mxu0
      %525 = vmatprep.mubr.f32.mxu0 0.0
      %526 = vmatmul.mubr.f32.gmra.mrb[0].mxu0 %v454
      %v527 = vpop.f32.mrb[0].mxu0
      %v528 = vadd.f32 0.0, %v527
      %v529 = vpop.f32.mrb[0].mxu0
      %530 = vdwg.mxu0
      %v531 = vadd.f32 %v446, %v523
      %v532 = vadd.f32 %v447, %v528
      %v533 = vtanh.pop %v531
      %v534 = vtanh.pop %v532
      %v535 = vmul.f32 %v419, 0.0
      %v536 = vmul.f32 %v421, 0.0
      %v537 = vsub.f32 1.0, %v419
      %v538 = vsub.f32 1.0, %v421
      %v539 = vmul.f32 %v537, %v533
      %v540 = vmul.f32 %v538, %v534
      %v541 = vadd.f32 %v535, %v539
      %v542 = vadd.f32 %v536, %v540
      %543 = vst.msk [vmem:[#allocation2] sm:$0xff] %vm327, %v541
      %544 = vst.msk [vmem:[#allocation2 + $0x8] sm:$0xff] %vm327, %v542
      %v546 = vsel %vm327, %v541, 0
      %v549 = vsel %vm327, %v542, 0
      %551 = vmatprep.subr.mxu0 0.0
      %552 = vmatpush1.msra.mxu0 %v319
      %553 = vmatprep.subr.mxu0 0.0
      %554 = vmatpush1.msra.mxu0 %v320
      %555 = vmatprep.subr.mxu0 0.0
      %556 = vmatpush1.msra.mxu0 %v321
      %557 = vmatprep.subr.mxu0 0.0
      %558 = vmatpush1.msra.mxu0 %v322
      %559 = vmatprep.subr.mxu0 0.0
      %560 = vmatpush1.msra.mxu0 0.0
      %561 = vmatprep.subr.mxu0 0.0
      %562 = vmatpush1.msra.mxu0 0.0
      %563 = vmatprep.subr.mxu0 0.0
      %564 = vmatpush1.msra.mxu0 0.0
      %565 = vmatprep.subr.mxu0 0.0
      %566 = vmatpush1.msra.mxu0 0.0
      %567 = vmatprep.subr.mxu0 0.0
      %568 = vmatpush1.msra.mxu0 0.0
      %569 = vmatprep.subr.mxu0 0.0
      %570 = vmatpush1.msra.mxu0 0.0
      %571 = vmatprep.subr.mxu0 0.0
      %572 = vmatpush1.msra.mxu0 0.0
      %573 = vmatprep.subr.mxu0 0.0
      %574 = vmatpush1.msra.mxu0 0.0
      %575 = vmatprep.subr.mxu0 0.0
      %576 = vmatpush1.msra.mxu0 0.0
      %577 = vmatprep.subr.mxu0 0.0
      %578 = vmatpush1.msra.mxu0 0.0
      %579 = vmatprep.subr.mxu0 0.0
      %580 = vmatpush1.msra.mxu0 0.0
      %581 = vmatprep.subr.mxu0 0.0
      %582 = vmatpush1.msra.mxu0 0.0
      %583 = vmatprep.subr.mxu0 0.0
      %584 = vmatpush1.msra.mxu0 0.0
      %585 = vmatprep.subr.mxu0 0.0
      %586 = vmatpush1.msra.mxu0 0.0
      %587 = vmatprep.subr.mxu0 0.0
      %588 = vmatpush1.msra.mxu0 0.0
      %589 = vmatprep.subr.mxu0 0.0
      %590 = vmatpush1.msra.mxu0 0.0
      %591 = vmatprep.subr.mxu0 0.0
      %592 = vmatpush1.msra.mxu0 0.0
      %593 = vmatprep.subr.mxu0 0.0
      %594 = vmatpush1.msra.mxu0 0.0
      %595 = vmatprep.subr.mxu0 0.0
      %596 = vmatpush1.msra.mxu0 0.0
      %597 = vmatprep.subr.mxu0 0.0
      %598 = vmatpush1.msra.mxu0 0.0
      %599 = vmatprep.subr.mxu0 0.0
      %600 = vmatpush1.msra.mxu0 0.0
      %601 = vmatprep.subr.mxu0 0.0
      %602 = vmatpush1.msra.mxu0 0.0
      %603 = vmatprep.subr.mxu0 0.0
      %604 = vmatpush1.msra.mxu0 0.0
      %605 = vmatprep.subr.mxu0 0.0
      %606 = vmatpush1.msra.mxu0 0.0
      %607 = vmatprep.subr.mxu0 0.0
      %608 = vmatpush1.msra.mxu0 0.0
      %609 = vmatprep.subr.mxu0 0.0
      %610 = vmatpush1.msra.mxu0 0.0
      %611 = vmatprep.subr.mxu0 0.0
      %612 = vmatpush1.msra.mxu0 0.0
      %613 = vmatprep.subr.mxu0 0.0
      %614 = vmatpush1.msra.mxu0 0.0
      %615 = vmatprep.mubr.f32.mxu0 0.0
      %616 = vmatmul.mubr.f32.gmra.mrb[0].mxu0 %v546
      %v617 = vpop.f32.mrb[0].mxu0
      %v618 = vadd.f32 0.0, %v617
      %v619 = vpop.f32.mrb[0].mxu0
      %620 = vmatprep.mubr.f32.mxu0 0.0
      %621 = vmatmul.mubr.f32.gmra.mrb[0].mxu0 %v549
      %v622 = vpop.f32.mrb[0].mxu0
      %v623 = vadd.f32 0.0, %v622
      %v624 = vpop.f32.mrb[0].mxu0
      %625 = vdwg.mxu0
      %v626 = vld [vmem:[%s303 + $0x10] sm:$0xff]
      %v627 = vld [vmem:[%s303 + $0x18] sm:$0xff]
      %v628 = vadd.f32 %v626, %v618
      %v629 = vadd.f32 %v627, %v623
      %v630 = vxor.u32 %v628, 2147483648
      %v631 = vxor.u32 %v629, 2147483648
      %v632 = vmul.f32 %v630, 1.442695
      %v633 = vpow.pop %v632
      %v634 = vmul.f32 %v631, 1.442695
      %v635 = vpow.pop %v634
      %v636 = vadd.f32 %v633, 1.0
      %v637 = vadd.f32 %v635, 1.0
      %v638 = vrcp.pop %v636
      %v639 = vmul.f32 1.0, %v638
      %v640 = vrcp.pop %v637
      %v641 = vmul.f32 1.0, %v640
      %v642 = vld [vmem:[%s308 + $0x10] sm:$0xff]
      %v643 = vld [vmem:[%s308 + $0x18] sm:$0xff]
      %646 = vrot.lane.b32.xlu0 %v618, 96
      %v647 = vpop.permute.xlu0 %646
      %648 = vrot.lane.b32.xlu0 %v623, 96
      %v649 = vpop.permute.xlu0 %648
      %v652 = vadd.f32 %v642, %v647
      %v653 = vadd.f32 %v643, %v649
      %v654 = vxor.u32 %v652, 2147483648
      %v655 = vxor.u32 %v653, 2147483648
      %v656 = vmul.f32 %v654, 1.442695
      %v657 = vpow.pop %v656
      %v658 = vmul.f32 %v655, 1.442695
      %v659 = vpow.pop %v658
      %v660 = vadd.f32 %v657, 1.0
      %v661 = vadd.f32 %v659, 1.0
      %v662 = vrcp.pop %v660
      %v663 = vmul.f32 1.0, %v662
      %v664 = vrcp.pop %v661
      %v665 = vmul.f32 1.0, %v664
      %v666 = vld [vmem:[%s313 + $0x10] sm:$0xff]
      %v667 = vld [vmem:[%s313 + $0x18] sm:$0xff]
      %v668 = vmul.f32 %v541, %v663
      %v669 = vmul.f32 %v542, %v665
      %v671 = vsel %vm327, %v668, 0
      %v674 = vsel %vm327, %v669, 0
      %676 = vmatprep.subr.mxu0 0.0
      %677 = vmatpush1.msra.mxu0 %v323
      %678 = vmatprep.subr.mxu0 0.0
      %679 = vmatpush1.msra.mxu0 %v324
      %680 = vmatprep.subr.mxu0 0.0
      %681 = vmatpush1.msra.mxu0 %v325
      %682 = vmatprep.subr.mxu0 0.0
      %683 = vmatpush1.msra.mxu0 %v326
      %684 = vmatprep.subr.mxu0 0.0
      %685 = vmatpush1.msra.mxu0 0.0
      %686 = vmatprep.subr.mxu0 0.0
      %687 = vmatpush1.msra.mxu0 0.0
      %688 = vmatprep.subr.mxu0 0.0
      %689 = vmatpush1.msra.mxu0 0.0
      %690 = vmatprep.subr.mxu0 0.0
      %691 = vmatpush1.msra.mxu0 0.0
      %692 = vmatprep.subr.mxu0 0.0
      %693 = vmatpush1.msra.mxu0 0.0
      %694 = vmatprep.subr.mxu0 0.0
      %695 = vmatpush1.msra.mxu0 0.0
      %696 = vmatprep.subr.mxu0 0.0
      %697 = vmatpush1.msra.mxu0 0.0
      %698 = vmatprep.subr.mxu0 0.0
      %699 = vmatpush1.msra.mxu0 0.0
      %700 = vmatprep.subr.mxu0 0.0
      %701 = vmatpush1.msra.mxu0 0.0
      %702 = vmatprep.subr.mxu0 0.0
      %703 = vmatpush1.msra.mxu0 0.0
      %704 = vmatprep.subr.mxu0 0.0
      %705 = vmatpush1.msra.mxu0 0.0
      %706 = vmatprep.subr.mxu0 0.0
      %707 = vmatpush1.msra.mxu0 0.0
      %708 = vmatprep.subr.mxu0 0.0
      %709 = vmatpush1.msra.mxu0 0.0
      %710 = vmatprep.subr.mxu0 0.0
      %711 = vmatpush1.msra.mxu0 0.0
      %712 = vmatprep.subr.mxu0 0.0
      %713 = vmatpush1.msra.mxu0 0.0
      %714 = vmatprep.subr.mxu0 0.0
      %715 = vmatpush1.msra.mxu0 0.0
      %716 = vmatprep.subr.mxu0 0.0
      %717 = vmatpush1.msra.mxu0 0.0
      %718 = vmatprep.subr.mxu0 0.0
      %719 = vmatpush1.msra.mxu0 0.0
      %720 = vmatprep.subr.mxu0 0.0
      %721 = vmatpush1.msra.mxu0 0.0
      %722 = vmatprep.subr.mxu0 0.0
      %723 = vmatpush1.msra.mxu0 0.0
      %724 = vmatprep.subr.mxu0 0.0
      %725 = vmatpush1.msra.mxu0 0.0
      %726 = vmatprep.subr.mxu0 0.0
      %727 = vmatpush1.msra.mxu0 0.0
      %728 = vmatprep.subr.mxu0 0.0
      %729 = vmatpush1.msra.mxu0 0.0
      %730 = vmatprep.subr.mxu0 0.0
      %731 = vmatpush1.msra.mxu0 0.0
      %732 = vmatprep.subr.mxu0 0.0
      %733 = vmatpush1.msra.mxu0 0.0
      %734 = vmatprep.subr.mxu0 0.0
      %735 = vmatpush1.msra.mxu0 0.0
      %736 = vmatprep.subr.mxu0 0.0
      %737 = vmatpush1.msra.mxu0 0.0
      %738 = vmatprep.subr.mxu0 0.0
      %739 = vmatpush1.msra.mxu0 0.0
      %740 = vmatprep.mubr.f32.mxu0 0.0
      %741 = vmatmul.mubr.f32.gmra.mrb[0].mxu0 %v671
      %v742 = vpop.f32.mrb[0].mxu0
      %v743 = vadd.f32 0.0, %v742
      %v744 = vpop.f32.mrb[0].mxu0
      %745 = vmatprep.mubr.f32.mxu0 0.0
      %746 = vmatmul.mubr.f32.gmra.mrb[0].mxu0 %v674
      %v747 = vpop.f32.mrb[0].mxu0
      %v748 = vadd.f32 0.0, %v747
      %v749 = vpop.f32.mrb[0].mxu0
      %750 = vdwg.mxu0
      %v751 = vadd.f32 %v666, %v743
      %v752 = vadd.f32 %v667, %v748
      %v753 = vtanh.pop %v751
      %v754 = vtanh.pop %v752
      %v755 = vmul.f32 %v639, %v541
      %v756 = vmul.f32 %v641, %v542
      %v757 = vsub.f32 1.0, %v639
      %v758 = vsub.f32 1.0, %v641
      %v759 = vmul.f32 %v757, %v753
      %v760 = vmul.f32 %v758, %v754
      %v761 = vadd.f32 %v755, %v759
      %v762 = vadd.f32 %v756, %v760
      %763 = vst.msk [vmem:[#allocation2 + $0x10] sm:$0xff] %vm327, %v761
      %764 = vst.msk [vmem:[#allocation2 + $0x18] sm:$0xff] %vm327, %v762
      %v766 = vsel %vm327, %v761, 0
      %v769 = vsel %vm327, %v762, 0
      %771 = vmatprep.subr.mxu0 0.0
      %772 = vmatpush1.msra.mxu0 %v319
      %773 = vmatprep.subr.mxu0 0.0
      %774 = vmatpush1.msra.mxu0 %v320
      %775 = vmatprep.subr.mxu0 0.0
      %776 = vmatpush1.msra.mxu0 %v321
      %777 = vmatprep.subr.mxu0 0.0
      %778 = vmatpush1.msra.mxu0 %v322
      %779 = vmatprep.subr.mxu0 0.0
      %780 = vmatpush1.msra.mxu0 0.0
      %781 = vmatprep.subr.mxu0 0.0
      %782 = vmatpush1.msra.mxu0 0.0
      %783 = vmatprep.subr.mxu0 0.0
      %784 = vmatpush1.msra.mxu0 0.0
      %785 = vmatprep.subr.mxu0 0.0
      %786 = vmatpush1.msra.mxu0 0.0
      %787 = vmatprep.subr.mxu0 0.0
      %788 = vmatpush1.msra.mxu0 0.0
      %789 = vmatprep.subr.mxu0 0.0
      %790 = vmatpush1.msra.mxu0 0.0
      %791 = vmatprep.subr.mxu0 0.0
      %792 = vmatpush1.msra.mxu0 0.0
      %793 = vmatprep.subr.mxu0 0.0
      %794 = vmatpush1.msra.mxu0 0.0
      %795 = vmatprep.subr.mxu0 0.0
      %796 = vmatpush1.msra.mxu0 0.0
      %797 = vmatprep.subr.mxu0 0.0
      %798 = vmatpush1.msra.mxu0 0.0
      %799 = vmatprep.subr.mxu0 0.0
      %800 = vmatpush1.msra.mxu0 0.0
      %801 = vmatprep.subr.mxu0 0.0
      %802 = vmatpush1.msra.mxu0 0.0
      %803 = vmatprep.subr.mxu0 0.0
      %804 = vmatpush1.msra.mxu0 0.0
      %805 = vmatprep.subr.mxu0 0.0
      %806 = vmatpush1.msra.mxu0 0.0
      %807 = vmatprep.subr.mxu0 0.0
      %808 = vmatpush1.msra.mxu0 0.0
      %809 = vmatprep.subr.mxu0 0.0
      %810 = vmatpush1.msra.mxu0 0.0
      %811 = vmatprep.subr.mxu0 0.0
      %812 = vmatpush1.msra.mxu0 0.0
      %813 = vmatprep.subr.mxu0 0.0
      %814 = vmatpush1.msra.mxu0 0.0
      %815 = vmatprep.subr.mxu0 0.0
      %816 = vmatpush1.msra.mxu0 0.0
      %817 = vmatprep.subr.mxu0 0.0
      %818 = vmatpush1.msra.mxu0 0.0
      %819 = vmatprep.subr.mxu0 0.0
      %820 = vmatpush1.msra.mxu0 0.0
      %821 = vmatprep.subr.mxu0 0.0
      %822 = vmatpush1.msra.mxu0 0.0
      %823 = vmatprep.subr.mxu0 0.0
      %824 = vmatpush1.msra.mxu0 0.0
      %825 = vmatprep.subr.mxu0 0.0
      %826 = vmatpush1.msra.mxu0 0.0
      %827 = vmatprep.subr.mxu0 0.0
      %828 = vmatpush1.msra.mxu0 0.0
      %829 = vmatprep.subr.mxu0 0.0
      %830 = vmatpush1.msra.mxu0 0.0
      %831 = vmatprep.subr.mxu0 0.0
      %832 = vmatpush1.msra.mxu0 0.0
      %833 = vmatprep.subr.mxu0 0.0
      %834 = vmatpush1.msra.mxu0 0.0
      %835 = vmatprep.mubr.f32.mxu0 0.0
      %836 = vmatmul.mubr.f32.gmra.mrb[0].mxu0 %v766
      %v837 = vpop.f32.mrb[0].mxu0
      %v838 = vadd.f32 0.0, %v837
      %v839 = vpop.f32.mrb[0].mxu0
      %840 = vmatprep.mubr.f32.mxu0 0.0
      %841 = vmatmul.mubr.f32.gmra.mrb[0].mxu0 %v769
      %v842 = vpop.f32.mrb[0].mxu0
      %v843 = vadd.f32 0.0, %v842
      %v844 = vpop.f32.mrb[0].mxu0
      %845 = vdwg.mxu0
      %v846 = vld [vmem:[%s303 + $0x20] sm:$0xff]
      %v847 = vld [vmem:[%s303 + $0x28] sm:$0xff]
      %v848 = vadd.f32 %v846, %v838
      %v849 = vadd.f32 %v847, %v843
      %v850 = vxor.u32 %v848, 2147483648
      %v851 = vxor.u32 %v849, 2147483648
      %v852 = vmul.f32 %v850, 1.442695
      %v853 = vpow.pop %v852
      %v854 = vmul.f32 %v851, 1.442695
      %v855 = vpow.pop %v854
      %v856 = vadd.f32 %v853, 1.0
      %v857 = vadd.f32 %v855, 1.0
      %v858 = vrcp.pop %v856
      %v859 = vmul.f32 1.0, %v858
      %v860 = vrcp.pop %v857
      %v861 = vmul.f32 1.0, %v860
      %v862 = vld [vmem:[%s308 + $0x20] sm:$0xff]
      %v863 = vld [vmem:[%s308 + $0x28] sm:$0xff]
      %866 = vrot.lane.b32.xlu0 %v838, 96
      %v867 = vpop.permute.xlu0 %866
      %868 = vrot.lane.b32.xlu0 %v843, 96
      %v869 = vpop.permute.xlu0 %868
      %v872 = vadd.f32 %v862, %v867
      %v873 = vadd.f32 %v863, %v869
      %v874 = vxor.u32 %v872, 2147483648
      %v875 = vxor.u32 %v873, 2147483648
      %v876 = vmul.f32 %v874, 1.442695
      %v877 = vpow.pop %v876
      %v878 = vmul.f32 %v875, 1.442695
      %v879 = vpow.pop %v878
      %v880 = vadd.f32 %v877, 1.0
      %v881 = vadd.f32 %v879, 1.0
      %v882 = vrcp.pop %v880
      %v883 = vmul.f32 1.0, %v882
      %v884 = vrcp.pop %v881
      %v885 = vmul.f32 1.0, %v884
      %v886 = vld [vmem:[%s313 + $0x20] sm:$0xff]
      %v887 = vld [vmem:[%s313 + $0x28] sm:$0xff]
      %v888 = vmul.f32 %v761, %v883
      %v889 = vmul.f32 %v762, %v885
      %v891 = vsel %vm327, %v888, 0
      %v894 = vsel %vm327, %v889, 0
      %896 = vmatprep.subr.mxu0 0.0
      %897 = vmatpush1.msra.mxu0 %v323
      %898 = vmatprep.subr.mxu0 0.0
      %899 = vmatpush1.msra.mxu0 %v324
      %900 = vmatprep.subr.mxu0 0.0
      %901 = vmatpush1.msra.mxu0 %v325
      %902 = vmatprep.subr.mxu0 0.0
      %903 = vmatpush1.msra.mxu0 %v326
      %904 = vmatprep.subr.mxu0 0.0
      %905 = vmatpush1.msra.mxu0 0.0
      %906 = vmatprep.subr.mxu0 0.0
      %907 = vmatpush1.msra.mxu0 0.0
      %908 = vmatprep.subr.mxu0 0.0
      %909 = vmatpush1.msra.mxu0 0.0
      %910 = vmatprep.subr.mxu0 0.0
      %911 = vmatpush1.msra.mxu0 0.0
      %912 = vmatprep.subr.mxu0 0.0
      %913 = vmatpush1.msra.mxu0 0.0
      %914 = vmatprep.subr.mxu0 0.0
      %915 = vmatpush1.msra.mxu0 0.0
      %916 = vmatprep.subr.mxu0 0.0
      %917 = vmatpush1.msra.mxu0 0.0
      %918 = vmatprep.subr.mxu0 0.0
      %919 = vmatpush1.msra.mxu0 0.0
      %920 = vmatprep.subr.mxu0 0.0
      %921 = vmatpush1.msra.mxu0 0.0
      %922 = vmatprep.subr.mxu0 0.0
      %923 = vmatpush1.msra.mxu0 0.0
      %924 = vmatprep.subr.mxu0 0.0
      %925 = vmatpush1.msra.mxu0 0.0
      %926 = vmatprep.subr.mxu0 0.0
      %927 = vmatpush1.msra.mxu0 0.0
      %928 = vmatprep.subr.mxu0 0.0
      %929 = vmatpush1.msra.mxu0 0.0
      %930 = vmatprep.subr.mxu0 0.0
      %931 = vmatpush1.msra.mxu0 0.0
      %932 = vmatprep.subr.mxu0 0.0
      %933 = vmatpush1.msra.mxu0 0.0
      %934 = vmatprep.subr.mxu0 0.0
      %935 = vmatpush1.msra.mxu0 0.0
      %936 = vmatprep.subr.mxu0 0.0
      %937 = vmatpush1.msra.mxu0 0.0
      %938 = vmatprep.subr.mxu0 0.0
      %939 = vmatpush1.msra.mxu0 0.0
      %940 = vmatprep.subr.mxu0 0.0
      %941 = vmatpush1.msra.mxu0 0.0
      %942 = vmatprep.subr.mxu0 0.0
      %943 = vmatpush1.msra.mxu0 0.0
      %944 = vmatprep.subr.mxu0 0.0
      %945 = vmatpush1.msra.mxu0 0.0
      %946 = vmatprep.subr.mxu0 0.0
      %947 = vmatpush1.msra.mxu0 0.0
      %948 = vmatprep.subr.mxu0 0.0
      %949 = vmatpush1.msra.mxu0 0.0
      %950 = vmatprep.subr.mxu0 0.0
      %951 = vmatpush1.msra.mxu0 0.0
      %952 = vmatprep.subr.mxu0 0.0
      %953 = vmatpush1.msra.mxu0 0.0
      %954 = vmatprep.subr.mxu0 0.0
      %955 = vmatpush1.msra.mxu0 0.0
      %956 = vmatprep.subr.mxu0 0.0
      %957 = vmatpush1.msra.mxu0 0.0
      %958 = vmatprep.subr.mxu0 0.0
      %959 = vmatpush1.msra.mxu0 0.0
      %960 = vmatprep.mubr.f32.mxu0 0.0
      %961 = vmatmul.mubr.f32.gmra.mrb[0].mxu0 %v891
      %v962 = vpop.f32.mrb[0].mxu0
      %v963 = vadd.f32 0.0, %v962
      %v964 = vpop.f32.mrb[0].mxu0
      %965 = vmatprep.mubr.f32.mxu0 0.0
      %966 = vmatmul.mubr.f32.gmra.mrb[0].mxu0 %v894
      %v967 = vpop.f32.mrb[0].mxu0
      %v968 = vadd.f32 0.0, %v967
      %v969 = vpop.f32.mrb[0].mxu0
      %970 = vdwg.mxu0
      %v971 = vadd.f32 %v886, %v963
      %v972 = vadd.f32 %v887, %v968
      %v973 = vtanh.pop %v971
      %v974 = vtanh.pop %v972
      %v975 = vmul.f32 %v859, %v761
      %v976 = vmul.f32 %v861, %v762
      %v977 = vsub.f32 1.0, %v859
      %v978 = vsub.f32 1.0, %v861
      %v979 = vmul.f32 %v977, %v973
      %v980 = vmul.f32 %v978, %v974
      %v981 = vadd.f32 %v975, %v979
      %v982 = vadd.f32 %v976, %v980
      %983 = vst.msk [vmem:[#allocation2 + $0x20] sm:$0xff] %vm327, %v981
      %984 = vst.msk [vmem:[#allocation2 + $0x28] sm:$0xff] %vm327, %v982
      %v986 = vsel %vm327, %v981, 0
      %v989 = vsel %vm327, %v982, 0
      %991 = vmatprep.subr.mxu0 0.0
      %992 = vmatpush1.msra.mxu0 %v319
      %993 = vmatprep.subr.mxu0 0.0
      %994 = vmatpush1.msra.mxu0 %v320
      %995 = vmatprep.subr.mxu0 0.0
      %996 = vmatpush1.msra.mxu0 %v321
      %997 = vmatprep.subr.mxu0 0.0
      %998 = vmatpush1.msra.mxu0 %v322
      %999 = vmatprep.subr.mxu0 0.0
      %1000 = vmatpush1.msra.mxu0 0.0
      %1001 = vmatprep.subr.mxu0 0.0
      %1002 = vmatpush1.msra.mxu0 0.0
      %1003 = vmatprep.subr.mxu0 0.0
      %1004 = vmatpush1.msra.mxu0 0.0
      %1005 = vmatprep.subr.mxu0 0.0
      %1006 = vmatpush1.msra.mxu0 0.0
      %1007 = vmatprep.subr.mxu0 0.0
      %1008 = vmatpush1.msra.mxu0 0.0
      %1009 = vmatprep.subr.mxu0 0.0
      %1010 = vmatpush1.msra.mxu0 0.0
      %1011 = vmatprep.subr.mxu0 0.0
      %1012 = vmatpush1.msra.mxu0 0.0
      %1013 = vmatprep.subr.mxu0 0.0
      %1014 = vmatpush1.msra.mxu0 0.0
      %1015 = vmatprep.subr.mxu0 0.0
      %1016 = vmatpush1.msra.mxu0 0.0
      %1017 = vmatprep.subr.mxu0 0.0
      %1018 = vmatpush1.msra.mxu0 0.0
      %1019 = vmatprep.subr.mxu0 0.0
      %1020 = vmatpush1.msra.mxu0 0.0
      %1021 = vmatprep.subr.mxu0 0.0
      %1022 = vmatpush1.msra.mxu0 0.0
      %1023 = vmatprep.subr.mxu0 0.0
      %1024 = vmatpush1.msra.mxu0 0.0
      %1025 = vmatprep.subr.mxu0 0.0
      %1026 = vmatpush1.msra.mxu0 0.0
      %1027 = vmatprep.subr.mxu0 0.0
      %1028 = vmatpush1.msra.mxu0 0.0
      %1029 = vmatprep.subr.mxu0 0.0
      %1030 = vmatpush1.msra.mxu0 0.0
      %1031 = vmatprep.subr.mxu0 0.0
      %1032 = vmatpush1.msra.mxu0 0.0
      %1033 = vmatprep.subr.mxu0 0.0
      %1034 = vmatpush1.msra.mxu0 0.0
      %1035 = vmatprep.subr.mxu0 0.0
      %1036 = vmatpush1.msra.mxu0 0.0
      %1037 = vmatprep.subr.mxu0 0.0
      %1038 = vmatpush1.msra.mxu0 0.0
      %1039 = vmatprep.subr.mxu0 0.0
      %1040 = vmatpush1.msra.mxu0 0.0
      %1041 = vmatprep.subr.mxu0 0.0
      %1042 = vmatpush1.msra.mxu0 0.0
      %1043 = vmatprep.subr.mxu0 0.0
      %1044 = vmatpush1.msra.mxu0 0.0
      %1045 = vmatprep.subr.mxu0 0.0
      %1046 = vmatpush1.msra.mxu0 0.0
      %1047 = vmatprep.subr.mxu0 0.0
      %1048 = vmatpush1.msra.mxu0 0.0
      %1049 = vmatprep.subr.mxu0 0.0
      %1050 = vmatpush1.msra.mxu0 0.0
      %1051 = vmatprep.subr.mxu0 0.0
      %1052 = vmatpush1.msra.mxu0 0.0
      %1053 = vmatprep.subr.mxu0 0.0
      %1054 = vmatpush1.msra.mxu0 0.0
      %1055 = vmatprep.mubr.f32.mxu0 0.0
      %1056 = vmatmul.mubr.f32.gmra.mrb[0].mxu0 %v986
      %v1057 = vpop.f32.mrb[0].mxu0
      %v1058 = vadd.f32 0.0, %v1057
      %v1059 = vpop.f32.mrb[0].mxu0
      %1060 = vmatprep.mubr.f32.mxu0 0.0
      %1061 = vmatmul.mubr.f32.gmra.mrb[0].mxu0 %v989
      %v1062 = vpop.f32.mrb[0].mxu0
      %v1063 = vadd.f32 0.0, %v1062
      %v1064 = vpop.f32.mrb[0].mxu0
      %1065 = vdwg.mxu0
      %v1066 = vld [vmem:[%s303 + $0x30] sm:$0xff]
      %v1067 = vld [vmem:[%s303 + $0x38] sm:$0xff]
      %v1068 = vadd.f32 %v1066, %v1058
      %v1069 = vadd.f32 %v1067, %v1063
      %v1070 = vxor.u32 %v1068, 2147483648
      %v1071 = vxor.u32 %v1069, 2147483648
      %v1072 = vmul.f32 %v1070, 1.442695
      %v1073 = vpow.pop %v1072
      %v1074 = vmul.f32 %v1071, 1.442695
      %v1075 = vpow.pop %v1074
      %v1076 = vadd.f32 %v1073, 1.0
      %v1077 = vadd.f32 %v1075, 1.0
      %v1078 = vrcp.pop %v1076
      %v1079 = vmul.f32 1.0, %v1078
      %v1080 = vrcp.pop %v1077
      %v1081 = vmul.f32 1.0, %v1080
      %v1082 = vld [vmem:[%s308 + $0x30] sm:$0xff]
      %v1083 = vld [vmem:[%s308 + $0x38] sm:$0xff]
      %1086 = vrot.lane.b32.xlu0 %v1058, 96
      %v1087 = vpop.permute.xlu0 %1086
      %1088 = vrot.lane.b32.xlu0 %v1063, 96
      %v1089 = vpop.permute.xlu0 %1088
      %v1092 = vadd.f32 %v1082, %v1087
      %v1093 = vadd.f32 %v1083, %v1089
      %v1094 = vxor.u32 %v1092, 2147483648
      %v1095 = vxor.u32 %v1093, 2147483648
      %v1096 = vmul.f32 %v1094, 1.442695
      %v1097 = vpow.pop %v1096
      %v1098 = vmul.f32 %v1095, 1.442695
      %v1099 = vpow.pop %v1098
      %v1100 = vadd.f32 %v1097, 1.0
      %v1101 = vadd.f32 %v1099, 1.0
      %v1102 = vrcp.pop %v1100
      %v1103 = vmul.f32 1.0, %v1102
      %v1104 = vrcp.pop %v1101
      %v1105 = vmul.f32 1.0, %v1104
      %v1106 = vld [vmem:[%s313 + $0x30] sm:$0xff]
      %v1107 = vld [vmem:[%s313 + $0x38] sm:$0xff]
      %v1108 = vmul.f32 %v981, %v1103
      %v1109 = vmul.f32 %v982, %v1105
      %v1111 = vsel %vm327, %v1108, 0
      %v1114 = vsel %vm327, %v1109, 0
      %1116 = vmatprep.subr.mxu0 0.0
      %1117 = vmatpush1.msra.mxu0 %v323
      %1118 = vmatprep.subr.mxu0 0.0
      %1119 = vmatpush1.msra.mxu0 %v324
      %1120 = vmatprep.subr.mxu0 0.0
      %1121 = vmatpush1.msra.mxu0 %v325
      %1122 = vmatprep.subr.mxu0 0.0
      %1123 = vmatpush1.msra.mxu0 %v326
      %1124 = vmatprep.subr.mxu0 0.0
      %1125 = vmatpush1.msra.mxu0 0.0
      %1126 = vmatprep.subr.mxu0 0.0
      %1127 = vmatpush1.msra.mxu0 0.0
      %1128 = vmatprep.subr.mxu0 0.0
      %1129 = vmatpush1.msra.mxu0 0.0
      %1130 = vmatprep.subr.mxu0 0.0
      %1131 = vmatpush1.msra.mxu0 0.0
      %1132 = vmatprep.subr.mxu0 0.0
      %1133 = vmatpush1.msra.mxu0 0.0
      %1134 = vmatprep.subr.mxu0 0.0
      %1135 = vmatpush1.msra.mxu0 0.0
      %1136 = vmatprep.subr.mxu0 0.0
      %1137 = vmatpush1.msra.mxu0 0.0
      %1138 = vmatprep.subr.mxu0 0.0
      %1139 = vmatpush1.msra.mxu0 0.0
      %1140 = vmatprep.subr.mxu0 0.0
      %1141 = vmatpush1.msra.mxu0 0.0
      %1142 = vmatprep.subr.mxu0 0.0
      %1143 = vmatpush1.msra.mxu0 0.0
      %1144 = vmatprep.subr.mxu0 0.0
      %1145 = vmatpush1.msra.mxu0 0.0
      %1146 = vmatprep.subr.mxu0 0.0
      %1147 = vmatpush1.msra.mxu0 0.0
      %1148 = vmatprep.subr.mxu0 0.0
      %1149 = vmatpush1.msra.mxu0 0.0
      %1150 = vmatprep.subr.mxu0 0.0
      %1151 = vmatpush1.msra.mxu0 0.0
      %1152 = vmatprep.subr.mxu0 0.0
      %1153 = vmatpush1.msra.mxu0 0.0
      %1154 = vmatprep.subr.mxu0 0.0
      %1155 = vmatpush1.msra.mxu0 0.0
      %1156 = vmatprep.subr.mxu0 0.0
      %1157 = vmatpush1.msra.mxu0 0.0
      %1158 = vmatprep.subr.mxu0 0.0
      %1159 = vmatpush1.msra.mxu0 0.0
      %1160 = vmatprep.subr.mxu0 0.0
      %1161 = vmatpush1.msra.mxu0 0.0
      %1162 = vmatprep.subr.mxu0 0.0
      %1163 = vmatpush1.msra.mxu0 0.0
      %1164 = vmatprep.subr.mxu0 0.0
      %1165 = vmatpush1.msra.mxu0 0.0
      %1166 = vmatprep.subr.mxu0 0.0
      %1167 = vmatpush1.msra.mxu0 0.0
      %1168 = vmatprep.subr.mxu0 0.0
      %1169 = vmatpush1.msra.mxu0 0.0
      %1170 = vmatprep.subr.mxu0 0.0
      %1171 = vmatpush1.msra.mxu0 0.0
      %1172 = vmatprep.subr.mxu0 0.0
      %1173 = vmatpush1.msra.mxu0 0.0
      %1174 = vmatprep.subr.mxu0 0.0
      %1175 = vmatpush1.msra.mxu0 0.0
      %1176 = vmatprep.subr.mxu0 0.0
      %1177 = vmatpush1.msra.mxu0 0.0
      %1178 = vmatprep.subr.mxu0 0.0
      %1179 = vmatpush1.msra.mxu0 0.0
      %1180 = vmatprep.mubr.f32.mxu0 0.0
      %1181 = vmatmul.mubr.f32.gmra.mrb[0].mxu0 %v1111
      %v1182 = vpop.f32.mrb[0].mxu0
      %v1183 = vadd.f32 0.0, %v1182
      %v1184 = vpop.f32.mrb[0].mxu0
      %1185 = vmatprep.mubr.f32.mxu0 0.0
      %1186 = vmatmul.mubr.f32.gmra.mrb[0].mxu0 %v1114
      %v1187 = vpop.f32.mrb[0].mxu0
      %v1188 = vadd.f32 0.0, %v1187
      %v1189 = vpop.f32.mrb[0].mxu0
      %1190 = vdwg.mxu0
      %v1191 = vadd.f32 %v1106, %v1183
      %v1192 = vadd.f32 %v1107, %v1188
      %v1193 = vtanh.pop %v1191
      %v1194 = vtanh.pop %v1192
      %v1195 = vmul.f32 %v1079, %v981
      %v1196 = vmul.f32 %v1081, %v982
      %v1197 = vsub.f32 1.0, %v1079
      %v1198 = vsub.f32 1.0, %v1081
      %v1199 = vmul.f32 %v1197, %v1193
      %v1200 = vmul.f32 %v1198, %v1194
      %v1201 = vadd.f32 %v1195, %v1199
      %v1202 = vadd.f32 %v1196, %v1200
      %1203 = vst.msk [vmem:[#allocation2 + $0x30] sm:$0xff] %vm327, %v1201
      %1204 = vst.msk [vmem:[#allocation2 + $0x38] sm:$0xff] %vm327, %v1202
      %v1206 = vsel %vm327, %v1201, 0
      %v1209 = vsel %vm327, %v1202, 0
      %1211 = vmatprep.subr.mxu0 0.0
      %1212 = vmatpush1.msra.mxu0 %v319
      %1213 = vmatprep.subr.mxu0 0.0
      %1214 = vmatpush1.msra.mxu0 %v320
      %1215 = vmatprep.subr.mxu0 0.0
      %1216 = vmatpush1.msra.mxu0 %v321
      %1217 = vmatprep.subr.mxu0 0.0
      %1218 = vmatpush1.msra.mxu0 %v322
      %1219 = vmatprep.subr.mxu0 0.0
      %1220 = vmatpush1.msra.mxu0 0.0
      %1221 = vmatprep.subr.mxu0 0.0
      %1222 = vmatpush1.msra.mxu0 0.0
      %1223 = vmatprep.subr.mxu0 0.0
      %1224 = vmatpush1.msra.mxu0 0.0
      %1225 = vmatprep.subr.mxu0 0.0
      %1226 = vmatpush1.msra.mxu0 0.0
      %1227 = vmatprep.subr.mxu0 0.0
      %1228 = vmatpush1.msra.mxu0 0.0
      %1229 = vmatprep.subr.mxu0 0.0
      %1230 = vmatpush1.msra.mxu0 0.0
      %1231 = vmatprep.subr.mxu0 0.0
      %1232 = vmatpush1.msra.mxu0 0.0
      %1233 = vmatprep.subr.mxu0 0.0
      %1234 = vmatpush1.msra.mxu0 0.0
      %1235 = vmatprep.subr.mxu0 0.0
      %1236 = vmatpush1.msra.mxu0 0.0
      %1237 = vmatprep.subr.mxu0 0.0
      %1238 = vmatpush1.msra.mxu0 0.0
      %1239 = vmatprep.subr.mxu0 0.0
      %1240 = vmatpush1.msra.mxu0 0.0
      %1241 = vmatprep.subr.mxu0 0.0
      %1242 = vmatpush1.msra.mxu0 0.0
      %1243 = vmatprep.subr.mxu0 0.0
      %1244 = vmatpush1.msra.mxu0 0.0
      %1245 = vmatprep.subr.mxu0 0.0
      %1246 = vmatpush1.msra.mxu0 0.0
      %1247 = vmatprep.subr.mxu0 0.0
      %1248 = vmatpush1.msra.mxu0 0.0
      %1249 = vmatprep.subr.mxu0 0.0
      %1250 = vmatpush1.msra.mxu0 0.0
      %1251 = vmatprep.subr.mxu0 0.0
      %1252 = vmatpush1.msra.mxu0 0.0
      %1253 = vmatprep.subr.mxu0 0.0
      %1254 = vmatpush1.msra.mxu0 0.0
      %1255 = vmatprep.subr.mxu0 0.0
      %1256 = vmatpush1.msra.mxu0 0.0
      %1257 = vmatprep.subr.mxu0 0.0
      %1258 = vmatpush1.msra.mxu0 0.0
      %1259 = vmatprep.subr.mxu0 0.0
      %1260 = vmatpush1.msra.mxu0 0.0
      %1261 = vmatprep.subr.mxu0 0.0
      %1262 = vmatpush1.msra.mxu0 0.0
      %1263 = vmatprep.subr.mxu0 0.0
      %1264 = vmatpush1.msra.mxu0 0.0
      %1265 = vmatprep.subr.mxu0 0.0
      %1266 = vmatpush1.msra.mxu0 0.0
      %1267 = vmatprep.subr.mxu0 0.0
      %1268 = vmatpush1.msra.mxu0 0.0
      %1269 = vmatprep.subr.mxu0 0.0
      %1270 = vmatpush1.msra.mxu0 0.0
      %1271 = vmatprep.subr.mxu0 0.0
      %1272 = vmatpush1.msra.mxu0 0.0
      %1273 = vmatprep.subr.mxu0 0.0
      %1274 = vmatpush1.msra.mxu0 0.0
      %1275 = vmatprep.mubr.f32.mxu0 0.0
      %1276 = vmatmul.mubr.f32.gmra.mrb[0].mxu0 %v1206
      %v1277 = vpop.f32.mrb[0].mxu0
      %v1278 = vadd.f32 0.0, %v1277
      %v1279 = vpop.f32.mrb[0].mxu0
      %1280 = vmatprep.mubr.f32.mxu0 0.0
      %1281 = vmatmul.mubr.f32.gmra.mrb[0].mxu0 %v1209
      %v1282 = vpop.f32.mrb[0].mxu0
      %v1283 = vadd.f32 0.0, %v1282
      %v1284 = vpop.f32.mrb[0].mxu0
      %1285 = vdwg.mxu0
      %v1286 = vld [vmem:[%s303 + $0x40] sm:$0xff]
      %v1287 = vld [vmem:[%s303 + $0x48] sm:$0xff]
      %v1288 = vadd.f32 %v1286, %v1278
      %v1289 = vadd.f32 %v1287, %v1283
      %v1290 = vxor.u32 %v1288, 2147483648
      %v1291 = vxor.u32 %v1289, 2147483648
      %v1292 = vmul.f32 %v1290, 1.442695
      %v1293 = vpow.pop %v1292
      %v1294 = vmul.f32 %v1291, 1.442695
      %v1295 = vpow.pop %v1294
      %v1296 = vadd.f32 %v1293, 1.0
      %v1297 = vadd.f32 %v1295, 1.0
      %v1298 = vrcp.pop %v1296
      %v1299 = vmul.f32 1.0, %v1298
      %v1300 = vrcp.pop %v1297
      %v1301 = vmul.f32 1.0, %v1300
      %v1302 = vld [vmem:[%s308 + $0x40] sm:$0xff]
      %v1303 = vld [vmem:[%s308 + $0x48] sm:$0xff]
      %1306 = vrot.lane.b32.xlu0 %v1278, 96
      %v1307 = vpop.permute.xlu0 %1306
      %1308 = vrot.lane.b32.xlu0 %v1283, 96
      %v1309 = vpop.permute.xlu0 %1308
      %v1312 = vadd.f32 %v1302, %v1307
      %v1313 = vadd.f32 %v1303, %v1309
      %v1314 = vxor.u32 %v1312, 2147483648
      %v1315 = vxor.u32 %v1313, 2147483648
      %v1316 = vmul.f32 %v1314, 1.442695
      %v1317 = vpow.pop %v1316
      %v1318 = vmul.f32 %v1315, 1.442695
      %v1319 = vpow.pop %v1318
      %v1320 = vadd.f32 %v1317, 1.0
      %v1321 = vadd.f32 %v1319, 1.0
      %v1322 = vrcp.pop %v1320
      %v1323 = vmul.f32 1.0, %v1322
      %v1324 = vrcp.pop %v1321
      %v1325 = vmul.f32 1.0, %v1324
      %v1326 = vld [vmem:[%s313 + $0x40] sm:$0xff]
      %v1327 = vld [vmem:[%s313 + $0x48] sm:$0xff]
      %v1328 = vmul.f32 %v1201, %v1323
      %v1329 = vmul.f32 %v1202, %v1325
      %v1331 = vsel %vm327, %v1328, 0
      %v1334 = vsel %vm327, %v1329, 0
      %1336 = vmatprep.subr.mxu0 0.0
      %1337 = vmatpush1.msra.mxu0 %v323
      %1338 = vmatprep.subr.mxu0 0.0
      %1339 = vmatpush1.msra.mxu0 %v324
      %1340 = vmatprep.subr.mxu0 0.0
      %1341 = vmatpush1.msra.mxu0 %v325
      %1342 = vmatprep.subr.mxu0 0.0
      %1343 = vmatpush1.msra.mxu0 %v326
      %1344 = vmatprep.subr.mxu0 0.0
      %1345 = vmatpush1.msra.mxu0 0.0
      %1346 = vmatprep.subr.mxu0 0.0
      %1347 = vmatpush1.msra.mxu0 0.0
      %1348 = vmatprep.subr.mxu0 0.0
      %1349 = vmatpush1.msra.mxu0 0.0
      %1350 = vmatprep.subr.mxu0 0.0
      %1351 = vmatpush1.msra.mxu0 0.0
      %1352 = vmatprep.subr.mxu0 0.0
      %1353 = vmatpush1.msra.mxu0 0.0
      %1354 = vmatprep.subr.mxu0 0.0
      %1355 = vmatpush1.msra.mxu0 0.0
      %1356 = vmatprep.subr.mxu0 0.0
      %1357 = vmatpush1.msra.mxu0 0.0
      %1358 = vmatprep.subr.mxu0 0.0
      %1359 = vmatpush1.msra.mxu0 0.0
      %1360 = vmatprep.subr.mxu0 0.0
      %1361 = vmatpush1.msra.mxu0 0.0
      %1362 = vmatprep.subr.mxu0 0.0
      %1363 = vmatpush1.msra.mxu0 0.0
      %1364 = vmatprep.subr.mxu0 0.0
      %1365 = vmatpush1.msra.mxu0 0.0
      %1366 = vmatprep.subr.mxu0 0.0
      %1367 = vmatpush1.msra.mxu0 0.0
      %1368 = vmatprep.subr.mxu0 0.0
      %1369 = vmatpush1.msra.mxu0 0.0
      %1370 = vmatprep.subr.mxu0 0.0
      %1371 = vmatpush1.msra.mxu0 0.0
      %1372 = vmatprep.subr.mxu0 0.0
      %1373 = vmatpush1.msra.mxu0 0.0
      %1374 = vmatprep.subr.mxu0 0.0
      %1375 = vmatpush1.msra.mxu0 0.0
      %1376 = vmatprep.subr.mxu0 0.0
      %1377 = vmatpush1.msra.mxu0 0.0
      %1378 = vmatprep.subr.mxu0 0.0
      %1379 = vmatpush1.msra.mxu0 0.0
      %1380 = vmatprep.subr.mxu0 0.0
      %1381 = vmatpush1.msra.mxu0 0.0
      %1382 = vmatprep.subr.mxu0 0.0
      %1383 = vmatpush1.msra.mxu0 0.0
      %1384 = vmatprep.subr.mxu0 0.0
      %1385 = vmatpush1.msra.mxu0 0.0
      %1386 = vmatprep.subr.mxu0 0.0
      %1387 = vmatpush1.msra.mxu0 0.0
      %1388 = vmatprep.subr.mxu0 0.0
      %1389 = vmatpush1.msra.mxu0 0.0
      %1390 = vmatprep.subr.mxu0 0.0
      %1391 = vmatpush1.msra.mxu0 0.0
      %1392 = vmatprep.subr.mxu0 0.0
      %1393 = vmatpush1.msra.mxu0 0.0
      %1394 = vmatprep.subr.mxu0 0.0
      %1395 = vmatpush1.msra.mxu0 0.0
      %1396 = vmatprep.subr.mxu0 0.0
      %1397 = vmatpush1.msra.mxu0 0.0
      %1398 = vmatprep.subr.mxu0 0.0
      %1399 = vmatpush1.msra.mxu0 0.0
      %1400 = vmatprep.mubr.f32.mxu0 0.0
      %1401 = vmatmul.mubr.f32.gmra.mrb[0].mxu0 %v1331
      %v1402 = vpop.f32.mrb[0].mxu0
      %v1403 = vadd.f32 0.0, %v1402
      %v1404 = vpop.f32.mrb[0].mxu0
      %1405 = vmatprep.mubr.f32.mxu0 0.0
      %1406 = vmatmul.mubr.f32.gmra.mrb[0].mxu0 %v1334
      %v1407 = vpop.f32.mrb[0].mxu0
      %v1408 = vadd.f32 0.0, %v1407
      %v1409 = vpop.f32.mrb[0].mxu0
      %1410 = vdwg.mxu0
      %v1411 = vadd.f32 %v1326, %v1403
      %v1412 = vadd.f32 %v1327, %v1408
      %v1413 = vtanh.pop %v1411
      %v1414 = vtanh.pop %v1412
      %v1415 = vmul.f32 %v1299, %v1201
      %v1416 = vmul.f32 %v1301, %v1202
      %v1417 = vsub.f32 1.0, %v1299
      %v1418 = vsub.f32 1.0, %v1301
      %v1419 = vmul.f32 %v1417, %v1413
      %v1420 = vmul.f32 %v1418, %v1414
      %v1421 = vadd.f32 %v1415, %v1419
      %v1422 = vadd.f32 %v1416, %v1420
      %1423 = vst.msk [vmem:[#allocation2 + $0x40] sm:$0xff] %vm327, %v1421
      %1424 = vst.msk [vmem:[#allocation2 + $0x48] sm:$0xff] %vm327, %v1422
      %v1426 = vsel %vm327, %v1421, 0
      %v1429 = vsel %vm327, %v1422, 0
      %1431 = vmatprep.subr.mxu0 0.0
      %1432 = vmatpush1.msra.mxu0 %v319
      %1433 = vmatprep.subr.mxu0 0.0
      %1434 = vmatpush1.msra.mxu0 %v320
      %1435 = vmatprep.subr.mxu0 0.0
      %1436 = vmatpush1.msra.mxu0 %v321
      %1437 = vmatprep.subr.mxu0 0.0
      %1438 = vmatpush1.msra.mxu0 %v322
      %1439 = vmatprep.subr.mxu0 0.0
      %1440 = vmatpush1.msra.mxu0 0.0
      %1441 = vmatprep.subr.mxu0 0.0
      %1442 = vmatpush1.msra.mxu0 0.0
      %1443 = vmatprep.subr.mxu0 0.0
      %1444 = vmatpush1.msra.mxu0 0.0
      %1445 = vmatprep.subr.mxu0 0.0
      %1446 = vmatpush1.msra.mxu0 0.0
      %1447 = vmatprep.subr.mxu0 0.0
      %1448 = vmatpush1.msra.mxu0 0.0
      %1449 = vmatprep.subr.mxu0 0.0
      %1450 = vmatpush1.msra.mxu0 0.0
      %1451 = vmatprep.subr.mxu0 0.0
      %1452 = vmatpush1.msra.mxu0 0.0
      %1453 = vmatprep.subr.mxu0 0.0
      %1454 = vmatpush1.msra.mxu0 0.0
      %1455 = vmatprep.subr.mxu0 0.0
      %1456 = vmatpush1.msra.mxu0 0.0
      %1457 = vmatprep.subr.mxu0 0.0
      %1458 = vmatpush1.msra.mxu0 0.0
      %1459 = vmatprep.subr.mxu0 0.0
      %1460 = vmatpush1.msra.mxu0 0.0
      %1461 = vmatprep.subr.mxu0 0.0
      %1462 = vmatpush1.msra.mxu0 0.0
      %1463 = vmatprep.subr.mxu0 0.0
      %1464 = vmatpush1.msra.mxu0 0.0
      %1465 = vmatprep.subr.mxu0 0.0
      %1466 = vmatpush1.msra.mxu0 0.0
      %1467 = vmatprep.subr.mxu0 0.0
      %1468 = vmatpush1.msra.mxu0 0.0
      %1469 = vmatprep.subr.mxu0 0.0
      %1470 = vmatpush1.msra.mxu0 0.0
      %1471 = vmatprep.subr.mxu0 0.0
      %1472 = vmatpush1.msra.mxu0 0.0
      %1473 = vmatprep.subr.mxu0 0.0
      %1474 = vmatpush1.msra.mxu0 0.0
      %1475 = vmatprep.subr.mxu0 0.0
      %1476 = vmatpush1.msra.mxu0 0.0
      %1477 = vmatprep.subr.mxu0 0.0
      %1478 = vmatpush1.msra.mxu0 0.0
      %1479 = vmatprep.subr.mxu0 0.0
      %1480 = vmatpush1.msra.mxu0 0.0
      %1481 = vmatprep.subr.mxu0 0.0
      %1482 = vmatpush1.msra.mxu0 0.0
      %1483 = vmatprep.subr.mxu0 0.0
      %1484 = vmatpush1.msra.mxu0 0.0
      %1485 = vmatprep.subr.mxu0 0.0
      %1486 = vmatpush1.msra.mxu0 0.0
      %1487 = vmatprep.subr.mxu0 0.0
      %1488 = vmatpush1.msra.mxu0 0.0
      %1489 = vmatprep.subr.mxu0 0.0
      %1490 = vmatpush1.msra.mxu0 0.0
      %1491 = vmatprep.subr.mxu0 0.0
      %1492 = vmatpush1.msra.mxu0 0.0
      %1493 = vmatprep.subr.mxu0 0.0
      %1494 = vmatpush1.msra.mxu0 0.0
      %1495 = vmatprep.mubr.f32.mxu0 0.0
      %1496 = vmatmul.mubr.f32.gmra.mrb[0].mxu0 %v1426
      %v1497 = vpop.f32.mrb[0].mxu0
      %v1498 = vadd.f32 0.0, %v1497
      %v1499 = vpop.f32.mrb[0].mxu0
      %1500 = vmatprep.mubr.f32.mxu0 0.0
      %1501 = vmatmul.mubr.f32.gmra.mrb[0].mxu0 %v1429
      %v1502 = vpop.f32.mrb[0].mxu0
      %v1503 = vadd.f32 0.0, %v1502
      %v1504 = vpop.f32.mrb[0].mxu0
      %1505 = vdwg.mxu0
      %v1506 = vld [vmem:[%s303 + $0x50] sm:$0xff]
      %v1507 = vld [vmem:[%s303 + $0x58] sm:$0xff]
      %v1508 = vadd.f32 %v1506, %v1498
      %v1509 = vadd.f32 %v1507, %v1503
      %v1510 = vxor.u32 %v1508, 2147483648
      %v1511 = vxor.u32 %v1509, 2147483648
      %v1512 = vmul.f32 %v1510, 1.442695
      %v1513 = vpow.pop %v1512
      %v1514 = vmul.f32 %v1511, 1.442695
      %v1515 = vpow.pop %v1514
      %v1516 = vadd.f32 %v1513, 1.0
      %v1517 = vadd.f32 %v1515, 1.0
      %v1518 = vrcp.pop %v1516
      %v1519 = vmul.f32 1.0, %v1518
      %v1520 = vrcp.pop %v1517
      %v1521 = vmul.f32 1.0, %v1520
      %v1522 = vld [vmem:[%s308 + $0x50] sm:$0xff]
      %v1523 = vld [vmem:[%s308 + $0x58] sm:$0xff]
      %1526 = vrot.lane.b32.xlu0 %v1498, 96
      %v1527 = vpop.permute.xlu0 %1526
      %1528 = vrot.lane.b32.xlu0 %v1503, 96
      %v1529 = vpop.permute.xlu0 %1528
      %v1532 = vadd.f32 %v1522, %v1527
      %v1533 = vadd.f32 %v1523, %v1529
      %v1534 = vxor.u32 %v1532, 2147483648
      %v1535 = vxor.u32 %v1533, 2147483648
      %v1536 = vmul.f32 %v1534, 1.442695
      %v1537 = vpow.pop %v1536
      %v1538 = vmul.f32 %v1535, 1.442695
      %v1539 = vpow.pop %v1538
      %v1540 = vadd.f32 %v1537, 1.0
      %v1541 = vadd.f32 %v1539, 1.0
      %v1542 = vrcp.pop %v1540
      %v1543 = vmul.f32 1.0, %v1542
      %v1544 = vrcp.pop %v1541
      %v1545 = vmul.f32 1.0, %v1544
      %v1546 = vld [vmem:[%s313 + $0x50] sm:$0xff]
      %v1547 = vld [vmem:[%s313 + $0x58] sm:$0xff]
      %v1548 = vmul.f32 %v1421, %v1543
      %v1549 = vmul.f32 %v1422, %v1545
      %v1551 = vsel %vm327, %v1548, 0
      %v1554 = vsel %vm327, %v1549, 0
      %1556 = vmatprep.subr.mxu0 0.0
      %1557 = vmatpush1.msra.mxu0 %v323
      %1558 = vmatprep.subr.mxu0 0.0
      %1559 = vmatpush1.msra.mxu0 %v324
      %1560 = vmatprep.subr.mxu0 0.0
      %1561 = vmatpush1.msra.mxu0 %v325
      %1562 = vmatprep.subr.mxu0 0.0
      %1563 = vmatpush1.msra.mxu0 %v326
      %1564 = vmatprep.subr.mxu0 0.0
      %1565 = vmatpush1.msra.mxu0 0.0
      %1566 = vmatprep.subr.mxu0 0.0
      %1567 = vmatpush1.msra.mxu0 0.0
      %1568 = vmatprep.subr.mxu0 0.0
      %1569 = vmatpush1.msra.mxu0 0.0
      %1570 = vmatprep.subr.mxu0 0.0
      %1571 = vmatpush1.msra.mxu0 0.0
      %1572 = vmatprep.subr.mxu0 0.0
      %1573 = vmatpush1.msra.mxu0 0.0
      %1574 = vmatprep.subr.mxu0 0.0
      %1575 = vmatpush1.msra.mxu0 0.0
      %1576 = vmatprep.subr.mxu0 0.0
      %1577 = vmatpush1.msra.mxu0 0.0
      %1578 = vmatprep.subr.mxu0 0.0
      %1579 = vmatpush1.msra.mxu0 0.0
      %1580 = vmatprep.subr.mxu0 0.0
      %1581 = vmatpush1.msra.mxu0 0.0
      %1582 = vmatprep.subr.mxu0 0.0
      %1583 = vmatpush1.msra.mxu0 0.0
      %1584 = vmatprep.subr.mxu0 0.0
      %1585 = vmatpush1.msra.mxu0 0.0
      %1586 = vmatprep.subr.mxu0 0.0
      %1587 = vmatpush1.msra.mxu0 0.0
      %1588 = vmatprep.subr.mxu0 0.0
      %1589 = vmatpush1.msra.mxu0 0.0
      %1590 = vmatprep.subr.mxu0 0.0
      %1591 = vmatpush1.msra.mxu0 0.0
      %1592 = vmatprep.subr.mxu0 0.0
      %1593 = vmatpush1.msra.mxu0 0.0
      %1594 = vmatprep.subr.mxu0 0.0
      %1595 = vmatpush1.msra.mxu0 0.0
      %1596 = vmatprep.subr.mxu0 0.0
      %1597 = vmatpush1.msra.mxu0 0.0
      %1598 = vmatprep.subr.mxu0 0.0
      %1599 = vmatpush1.msra.mxu0 0.0
      %1600 = vmatprep.subr.mxu0 0.0
      %1601 = vmatpush1.msra.mxu0 0.0
      %1602 = vmatprep.subr.mxu0 0.0
      %1603 = vmatpush1.msra.mxu0 0.0
      %1604 = vmatprep.subr.mxu0 0.0
      %1605 = vmatpush1.msra.mxu0 0.0
      %1606 = vmatprep.subr.mxu0 0.0
      %1607 = vmatpush1.msra.mxu0 0.0
      %1608 = vmatprep.subr.mxu0 0.0
      %1609 = vmatpush1.msra.mxu0 0.0
      %1610 = vmatprep.subr.mxu0 0.0
      %1611 = vmatpush1.msra.mxu0 0.0
      %1612 = vmatprep.subr.mxu0 0.0
      %1613 = vmatpush1.msra.mxu0 0.0
      %1614 = vmatprep.subr.mxu0 0.0
      %1615 = vmatpush1.msra.mxu0 0.0
      %1616 = vmatprep.subr.mxu0 0.0
      %1617 = vmatpush1.msra.mxu0 0.0
      %1618 = vmatprep.subr.mxu0 0.0
      %1619 = vmatpush1.msra.mxu0 0.0
      %1620 = vmatprep.mubr.f32.mxu0 0.0
      %1621 = vmatmul.mubr.f32.gmra.mrb[0].mxu0 %v1551
      %v1622 = vpop.f32.mrb[0].mxu0
      %v1623 = vadd.f32 0.0, %v1622
      %v1624 = vpop.f32.mrb[0].mxu0
      %1625 = vmatprep.mubr.f32.mxu0 0.0
      %1626 = vmatmul.mubr.f32.gmra.mrb[0].mxu0 %v1554
      %v1627 = vpop.f32.mrb[0].mxu0
      %v1628 = vadd.f32 0.0, %v1627
      %v1629 = vpop.f32.mrb[0].mxu0
      %1630 = vdwg.mxu0
      %v1631 = vadd.f32 %v1546, %v1623
      %v1632 = vadd.f32 %v1547, %v1628
      %v1633 = vtanh.pop %v1631
      %v1634 = vtanh.pop %v1632
      %v1635 = vmul.f32 %v1519, %v1421
      %v1636 = vmul.f32 %v1521, %v1422
      %v1637 = vsub.f32 1.0, %v1519
      %v1638 = vsub.f32 1.0, %v1521
      %v1639 = vmul.f32 %v1637, %v1633
      %v1640 = vmul.f32 %v1638, %v1634
      %v1641 = vadd.f32 %v1635, %v1639
      %v1642 = vadd.f32 %v1636, %v1640
      %1643 = vst.msk [vmem:[#allocation2 + $0x50] sm:$0xff] %vm327, %v1641
      %1644 = vst.msk [vmem:[#allocation2 + $0x58] sm:$0xff] %vm327, %v1642
      %v1646 = vsel %vm327, %v1641, 0
      %v1649 = vsel %vm327, %v1642, 0
      %1651 = vmatprep.subr.mxu0 0.0
      %1652 = vmatpush1.msra.mxu0 %v319
      %1653 = vmatprep.subr.mxu0 0.0
      %1654 = vmatpush1.msra.mxu0 %v320
      %1655 = vmatprep.subr.mxu0 0.0
      %1656 = vmatpush1.msra.mxu0 %v321
      %1657 = vmatprep.subr.mxu0 0.0
      %1658 = vmatpush1.msra.mxu0 %v322
      %1659 = vmatprep.subr.mxu0 0.0
      %1660 = vmatpush1.msra.mxu0 0.0
      %1661 = vmatprep.subr.mxu0 0.0
      %1662 = vmatpush1.msra.mxu0 0.0
      %1663 = vmatprep.subr.mxu0 0.0
      %1664 = vmatpush1.msra.mxu0 0.0
      %1665 = vmatprep.subr.mxu0 0.0
      %1666 = vmatpush1.msra.mxu0 0.0
      %1667 = vmatprep.subr.mxu0 0.0
      %1668 = vmatpush1.msra.mxu0 0.0
      %1669 = vmatprep.subr.mxu0 0.0
      %1670 = vmatpush1.msra.mxu0 0.0
      %1671 = vmatprep.subr.mxu0 0.0
      %1672 = vmatpush1.msra.mxu0 0.0
      %1673 = vmatprep.subr.mxu0 0.0
      %1674 = vmatpush1.msra.mxu0 0.0
      %1675 = vmatprep.subr.mxu0 0.0
      %1676 = vmatpush1.msra.mxu0 0.0
      %1677 = vmatprep.subr.mxu0 0.0
      %1678 = vmatpush1.msra.mxu0 0.0
      %1679 = vmatprep.subr.mxu0 0.0
      %1680 = vmatpush1.msra.mxu0 0.0
      %1681 = vmatprep.subr.mxu0 0.0
      %1682 = vmatpush1.msra.mxu0 0.0
      %1683 = vmatprep.subr.mxu0 0.0
      %1684 = vmatpush1.msra.mxu0 0.0
      %1685 = vmatprep.subr.mxu0 0.0
      %1686 = vmatpush1.msra.mxu0 0.0
      %1687 = vmatprep.subr.mxu0 0.0
      %1688 = vmatpush1.msra.mxu0 0.0
      %1689 = vmatprep.subr.mxu0 0.0
      %1690 = vmatpush1.msra.mxu0 0.0
      %1691 = vmatprep.subr.mxu0 0.0
      %1692 = vmatpush1.msra.mxu0 0.0
      %1693 = vmatprep.subr.mxu0 0.0
      %1694 = vmatpush1.msra.mxu0 0.0
      %1695 = vmatprep.subr.mxu0 0.0
      %1696 = vmatpush1.msra.mxu0 0.0
      %1697 = vmatprep.subr.mxu0 0.0
      %1698 = vmatpush1.msra.mxu0 0.0
      %1699 = vmatprep.subr.mxu0 0.0
      %1700 = vmatpush1.msra.mxu0 0.0
      %1701 = vmatprep.subr.mxu0 0.0
      %1702 = vmatpush1.msra.mxu0 0.0
      %1703 = vmatprep.subr.mxu0 0.0
      %1704 = vmatpush1.msra.mxu0 0.0
      %1705 = vmatprep.subr.mxu0 0.0
      %1706 = vmatpush1.msra.mxu0 0.0
      %1707 = vmatprep.subr.mxu0 0.0
      %1708 = vmatpush1.msra.mxu0 0.0
      %1709 = vmatprep.subr.mxu0 0.0
      %1710 = vmatpush1.msra.mxu0 0.0
      %1711 = vmatprep.subr.mxu0 0.0
      %1712 = vmatpush1.msra.mxu0 0.0
      %1713 = vmatprep.subr.mxu0 0.0
      %1714 = vmatpush1.msra.mxu0 0.0
      %1715 = vmatprep.mubr.f32.mxu0 0.0
      %1716 = vmatmul.mubr.f32.gmra.mrb[0].mxu0 %v1646
      %v1717 = vpop.f32.mrb[0].mxu0
      %v1718 = vadd.f32 0.0, %v1717
      %v1719 = vpop.f32.mrb[0].mxu0
      %1720 = vmatprep.mubr.f32.mxu0 0.0
      %1721 = vmatmul.mubr.f32.gmra.mrb[0].mxu0 %v1649
      %v1722 = vpop.f32.mrb[0].mxu0
      %v1723 = vadd.f32 0.0, %v1722
      %v1724 = vpop.f32.mrb[0].mxu0
      %1725 = vdwg.mxu0
      %v1726 = vld [vmem:[%s303 + $0x60] sm:$0xff]
      %v1727 = vld [vmem:[%s303 + $0x68] sm:$0xff]
      %v1728 = vadd.f32 %v1726, %v1718
      %v1729 = vadd.f32 %v1727, %v1723
      %v1730 = vxor.u32 %v1728, 2147483648
      %v1731 = vxor.u32 %v1729, 2147483648
      %v1732 = vmul.f32 %v1730, 1.442695
      %v1733 = vpow.pop %v1732
      %v1734 = vmul.f32 %v1731, 1.442695
      %v1735 = vpow.pop %v1734
      %v1736 = vadd.f32 %v1733, 1.0
      %v1737 = vadd.f32 %v1735, 1.0
      %v1738 = vrcp.pop %v1736
      %v1739 = vmul.f32 1.0, %v1738
      %v1740 = vrcp.pop %v1737
      %v1741 = vmul.f32 1.0, %v1740
      %v1742 = vld [vmem:[%s308 + $0x60] sm:$0xff]
      %v1743 = vld [vmem:[%s308 + $0x68] sm:$0xff]
      %1746 = vrot.lane.b32.xlu0 %v1718, 96
      %v1747 = vpop.permute.xlu0 %1746
      %1748 = vrot.lane.b32.xlu0 %v1723, 96
      %v1749 = vpop.permute.xlu0 %1748
      %v1752 = vadd.f32 %v1742, %v1747
      %v1753 = vadd.f32 %v1743, %v1749
      %v1754 = vxor.u32 %v1752, 2147483648
      %v1755 = vxor.u32 %v1753, 2147483648
      %v1756 = vmul.f32 %v1754, 1.442695
      %v1757 = vpow.pop %v1756
      %v1758 = vmul.f32 %v1755, 1.442695
      %v1759 = vpow.pop %v1758
      %v1760 = vadd.f32 %v1757, 1.0
      %v1761 = vadd.f32 %v1759, 1.0
      %v1762 = vrcp.pop %v1760
      %v1763 = vmul.f32 1.0, %v1762
      %v1764 = vrcp.pop %v1761
      %v1765 = vmul.f32 1.0, %v1764
      %v1766 = vld [vmem:[%s313 + $0x60] sm:$0xff]
      %v1767 = vld [vmem:[%s313 + $0x68] sm:$0xff]
      %v1768 = vmul.f32 %v1641, %v1763
      %v1769 = vmul.f32 %v1642, %v1765
      %v1771 = vsel %vm327, %v1768, 0
      %v1774 = vsel %vm327, %v1769, 0
      %1776 = vmatprep.subr.mxu0 0.0
      %1777 = vmatpush1.msra.mxu0 %v323
      %1778 = vmatprep.subr.mxu0 0.0
      %1779 = vmatpush1.msra.mxu0 %v324
      %1780 = vmatprep.subr.mxu0 0.0
      %1781 = vmatpush1.msra.mxu0 %v325
      %1782 = vmatprep.subr.mxu0 0.0
      %1783 = vmatpush1.msra.mxu0 %v326
      %1784 = vmatprep.subr.mxu0 0.0
      %1785 = vmatpush1.msra.mxu0 0.0
      %1786 = vmatprep.subr.mxu0 0.0
      %1787 = vmatpush1.msra.mxu0 0.0
      %1788 = vmatprep.subr.mxu0 0.0
      %1789 = vmatpush1.msra.mxu0 0.0
      %1790 = vmatprep.subr.mxu0 0.0
      %1791 = vmatpush1.msra.mxu0 0.0
      %1792 = vmatprep.subr.mxu0 0.0
      %1793 = vmatpush1.msra.mxu0 0.0
      %1794 = vmatprep.subr.mxu0 0.0
      %1795 = vmatpush1.msra.mxu0 0.0
      %1796 = vmatprep.subr.mxu0 0.0
      %1797 = vmatpush1.msra.mxu0 0.0
      %1798 = vmatprep.subr.mxu0 0.0
      %1799 = vmatpush1.msra.mxu0 0.0
      %1800 = vmatprep.subr.mxu0 0.0
      %1801 = vmatpush1.msra.mxu0 0.0
      %1802 = vmatprep.subr.mxu0 0.0
      %1803 = vmatpush1.msra.mxu0 0.0
      %1804 = vmatprep.subr.mxu0 0.0
      %1805 = vmatpush1.msra.mxu0 0.0
      %1806 = vmatprep.subr.mxu0 0.0
      %1807 = vmatpush1.msra.mxu0 0.0
      %1808 = vmatprep.subr.mxu0 0.0
      %1809 = vmatpush1.msra.mxu0 0.0
      %1810 = vmatprep.subr.mxu0 0.0
      %1811 = vmatpush1.msra.mxu0 0.0
      %1812 = vmatprep.subr.mxu0 0.0
      %1813 = vmatpush1.msra.mxu0 0.0
      %1814 = vmatprep.subr.mxu0 0.0
      %1815 = vmatpush1.msra.mxu0 0.0
      %1816 = vmatprep.subr.mxu0 0.0
      %1817 = vmatpush1.msra.mxu0 0.0
      %1818 = vmatprep.subr.mxu0 0.0
      %1819 = vmatpush1.msra.mxu0 0.0
      %1820 = vmatprep.subr.mxu0 0.0
      %1821 = vmatpush1.msra.mxu0 0.0
      %1822 = vmatprep.subr.mxu0 0.0
      %1823 = vmatpush1.msra.mxu0 0.0
      %1824 = vmatprep.subr.mxu0 0.0
      %1825 = vmatpush1.msra.mxu0 0.0
      %1826 = vmatprep.subr.mxu0 0.0
      %1827 = vmatpush1.msra.mxu0 0.0
      %1828 = vmatprep.subr.mxu0 0.0
      %1829 = vmatpush1.msra.mxu0 0.0
      %1830 = vmatprep.subr.mxu0 0.0
      %1831 = vmatpush1.msra.mxu0 0.0
      %1832 = vmatprep.subr.mxu0 0.0
      %1833 = vmatpush1.msra.mxu0 0.0
      %1834 = vmatprep.subr.mxu0 0.0
      %1835 = vmatpush1.msra.mxu0 0.0
      %1836 = vmatprep.subr.mxu0 0.0
      %1837 = vmatpush1.msra.mxu0 0.0
      %1838 = vmatprep.subr.mxu0 0.0
      %1839 = vmatpush1.msra.mxu0 0.0
      %1840 = vmatprep.mubr.f32.mxu0 0.0
      %1841 = vmatmul.mubr.f32.gmra.mrb[0].mxu0 %v1771
      %v1842 = vpop.f32.mrb[0].mxu0
      %v1843 = vadd.f32 0.0, %v1842
      %v1844 = vpop.f32.mrb[0].mxu0
      %1845 = vmatprep.mubr.f32.mxu0 0.0
      %1846 = vmatmul.mubr.f32.gmra.mrb[0].mxu0 %v1774
      %v1847 = vpop.f32.mrb[0].mxu0
      %v1848 = vadd.f32 0.0, %v1847
      %v1849 = vpop.f32.mrb[0].mxu0
      %1850 = vdwg.mxu0
      %v1851 = vadd.f32 %v1766, %v1843
      %v1852 = vadd.f32 %v1767, %v1848
      %v1853 = vtanh.pop %v1851
      %v1854 = vtanh.pop %v1852
      %v1855 = vmul.f32 %v1739, %v1641
      %v1856 = vmul.f32 %v1741, %v1642
      %v1857 = vsub.f32 1.0, %v1739
      %v1858 = vsub.f32 1.0, %v1741
      %v1859 = vmul.f32 %v1857, %v1853
      %v1860 = vmul.f32 %v1858, %v1854
      %v1861 = vadd.f32 %v1855, %v1859
      %v1862 = vadd.f32 %v1856, %v1860
      %1863 = vst.msk [vmem:[#allocation2 + $0x60] sm:$0xff] %vm327, %v1861
      %1864 = vst.msk [vmem:[#allocation2 + $0x68] sm:$0xff] %vm327, %v1862
      %v1866 = vsel %vm327, %v1861, 0
      %v1869 = vsel %vm327, %v1862, 0
      %1871 = vmatprep.subr.mxu0 0.0
      %1872 = vmatpush1.msra.mxu0 %v319
      %1873 = vmatprep.subr.mxu0 0.0
      %1874 = vmatpush1.msra.mxu0 %v320
      %1875 = vmatprep.subr.mxu0 0.0
      %1876 = vmatpush1.msra.mxu0 %v321
      %1877 = vmatprep.subr.mxu0 0.0
      %1878 = vmatpush1.msra.mxu0 %v322
      %1879 = vmatprep.subr.mxu0 0.0
      %1880 = vmatpush1.msra.mxu0 0.0
      %1881 = vmatprep.subr.mxu0 0.0
      %1882 = vmatpush1.msra.mxu0 0.0
      %1883 = vmatprep.subr.mxu0 0.0
      %1884 = vmatpush1.msra.mxu0 0.0
      %1885 = vmatprep.subr.mxu0 0.0
      %1886 = vmatpush1.msra.mxu0 0.0
      %1887 = vmatprep.subr.mxu0 0.0
      %1888 = vmatpush1.msra.mxu0 0.0
      %1889 = vmatprep.subr.mxu0 0.0
      %1890 = vmatpush1.msra.mxu0 0.0
      %1891 = vmatprep.subr.mxu0 0.0
      %1892 = vmatpush1.msra.mxu0 0.0
      %1893 = vmatprep.subr.mxu0 0.0
      %1894 = vmatpush1.msra.mxu0 0.0
      %1895 = vmatprep.subr.mxu0 0.0
      %1896 = vmatpush1.msra.mxu0 0.0
      %1897 = vmatprep.subr.mxu0 0.0
      %1898 = vmatpush1.msra.mxu0 0.0
      %1899 = vmatprep.subr.mxu0 0.0
      %1900 = vmatpush1.msra.mxu0 0.0
      %1901 = vmatprep.subr.mxu0 0.0
      %1902 = vmatpush1.msra.mxu0 0.0
      %1903 = vmatprep.subr.mxu0 0.0
      %1904 = vmatpush1.msra.mxu0 0.0
      %1905 = vmatprep.subr.mxu0 0.0
      %1906 = vmatpush1.msra.mxu0 0.0
      %1907 = vmatprep.subr.mxu0 0.0
      %1908 = vmatpush1.msra.mxu0 0.0
      %1909 = vmatprep.subr.mxu0 0.0
      %1910 = vmatpush1.msra.mxu0 0.0
      %1911 = vmatprep.subr.mxu0 0.0
      %1912 = vmatpush1.msra.mxu0 0.0
      %1913 = vmatprep.subr.mxu0 0.0
      %1914 = vmatpush1.msra.mxu0 0.0
      %1915 = vmatprep.subr.mxu0 0.0
      %1916 = vmatpush1.msra.mxu0 0.0
      %1917 = vmatprep.subr.mxu0 0.0
      %1918 = vmatpush1.msra.mxu0 0.0
      %1919 = vmatprep.subr.mxu0 0.0
      %1920 = vmatpush1.msra.mxu0 0.0
      %1921 = vmatprep.subr.mxu0 0.0
      %1922 = vmatpush1.msra.mxu0 0.0
      %1923 = vmatprep.subr.mxu0 0.0
      %1924 = vmatpush1.msra.mxu0 0.0
      %1925 = vmatprep.subr.mxu0 0.0
      %1926 = vmatpush1.msra.mxu0 0.0
      %1927 = vmatprep.subr.mxu0 0.0
      %1928 = vmatpush1.msra.mxu0 0.0
      %1929 = vmatprep.subr.mxu0 0.0
      %1930 = vmatpush1.msra.mxu0 0.0
      %1931 = vmatprep.subr.mxu0 0.0
      %1932 = vmatpush1.msra.mxu0 0.0
      %1933 = vmatprep.subr.mxu0 0.0
      %1934 = vmatpush1.msra.mxu0 0.0
      %1935 = vmatprep.mubr.f32.mxu0 0.0
      %1936 = vmatmul.mubr.f32.gmra.mrb[0].mxu0 %v1866
      %v1937 = vpop.f32.mrb[0].mxu0
      %v1938 = vadd.f32 0.0, %v1937
      %v1939 = vpop.f32.mrb[0].mxu0
      %1940 = vmatprep.mubr.f32.mxu0 0.0
      %1941 = vmatmul.mubr.f32.gmra.mrb[0].mxu0 %v1869
      %v1942 = vpop.f32.mrb[0].mxu0
      %v1943 = vadd.f32 0.0, %v1942
      %v1944 = vpop.f32.mrb[0].mxu0
      %1945 = vdwg.mxu0
      %v1946 = vld [vmem:[%s303 + $0x70] sm:$0xff]
      %v1947 = vld [vmem:[%s303 + $0x78] sm:$0xff]
      %v1948 = vadd.f32 %v1946, %v1938
      %v1949 = vadd.f32 %v1947, %v1943
      %v1950 = vxor.u32 %v1948, 2147483648
      %v1951 = vxor.u32 %v1949, 2147483648
      %v1952 = vmul.f32 %v1950, 1.442695
      %v1953 = vpow.pop %v1952
      %v1954 = vmul.f32 %v1951, 1.442695
      %v1955 = vpow.pop %v1954
      %v1956 = vadd.f32 %v1953, 1.0
      %v1957 = vadd.f32 %v1955, 1.0
      %v1958 = vrcp.pop %v1956
      %v1959 = vmul.f32 1.0, %v1958
      %v1960 = vrcp.pop %v1957
      %v1961 = vmul.f32 1.0, %v1960
      %v1962 = vld [vmem:[%s308 + $0x70] sm:$0xff]
      %v1963 = vld [vmem:[%s308 + $0x78] sm:$0xff]
      %1966 = vrot.lane.b32.xlu0 %v1938, 96
      %v1967 = vpop.permute.xlu0 %1966
      %1968 = vrot.lane.b32.xlu0 %v1943, 96
      %v1969 = vpop.permute.xlu0 %1968
      %v1972 = vadd.f32 %v1962, %v1967
      %v1973 = vadd.f32 %v1963, %v1969
      %v1974 = vxor.u32 %v1972, 2147483648
      %v1975 = vxor.u32 %v1973, 2147483648
      %v1976 = vmul.f32 %v1974, 1.442695
      %v1977 = vpow.pop %v1976
      %v1978 = vmul.f32 %v1975, 1.442695
      %v1979 = vpow.pop %v1978
      %v1980 = vadd.f32 %v1977, 1.0
      %v1981 = vadd.f32 %v1979, 1.0
      %v1982 = vrcp.pop %v1980
      %v1983 = vmul.f32 1.0, %v1982
      %v1984 = vrcp.pop %v1981
      %v1985 = vmul.f32 1.0, %v1984
      %v1986 = vld [vmem:[%s313 + $0x70] sm:$0xff]
      %v1987 = vld [vmem:[%s313 + $0x78] sm:$0xff]
      %v1988 = vmul.f32 %v1861, %v1983
      %v1989 = vmul.f32 %v1862, %v1985
      %v1991 = vsel %vm327, %v1988, 0
      %v1994 = vsel %vm327, %v1989, 0
      %1996 = vmatprep.subr.mxu0 0.0
      %1997 = vmatpush1.msra.mxu0 %v323
      %1998 = vmatprep.subr.mxu0 0.0
      %1999 = vmatpush1.msra.mxu0 %v324
      %2000 = vmatprep.subr.mxu0 0.0
      %2001 = vmatpush1.msra.mxu0 %v325
      %2002 = vmatprep.subr.mxu0 0.0
      %2003 = vmatpush1.msra.mxu0 %v326
      %2004 = vmatprep.subr.mxu0 0.0
      %2005 = vmatpush1.msra.mxu0 0.0
      %2006 = vmatprep.subr.mxu0 0.0
      %2007 = vmatpush1.msra.mxu0 0.0
      %2008 = vmatprep.subr.mxu0 0.0
      %2009 = vmatpush1.msra.mxu0 0.0
      %2010 = vmatprep.subr.mxu0 0.0
      %2011 = vmatpush1.msra.mxu0 0.0
      %2012 = vmatprep.subr.mxu0 0.0
      %2013 = vmatpush1.msra.mxu0 0.0
      %2014 = vmatprep.subr.mxu0 0.0
      %2015 = vmatpush1.msra.mxu0 0.0
      %2016 = vmatprep.subr.mxu0 0.0
      %2017 = vmatpush1.msra.mxu0 0.0
      %2018 = vmatprep.subr.mxu0 0.0
      %2019 = vmatpush1.msra.mxu0 0.0
      %2020 = vmatprep.subr.mxu0 0.0
      %2021 = vmatpush1.msra.mxu0 0.0
      %2022 = vmatprep.subr.mxu0 0.0
      %2023 = vmatpush1.msra.mxu0 0.0
      %2024 = vmatprep.subr.mxu0 0.0
      %2025 = vmatpush1.msra.mxu0 0.0
      %2026 = vmatprep.subr.mxu0 0.0
      %2027 = vmatpush1.msra.mxu0 0.0
      %2028 = vmatprep.subr.mxu0 0.0
      %2029 = vmatpush1.msra.mxu0 0.0
      %2030 = vmatprep.subr.mxu0 0.0
      %2031 = vmatpush1.msra.mxu0 0.0
      %2032 = vmatprep.subr.mxu0 0.0
      %2033 = vmatpush1.msra.mxu0 0.0
      %2034 = vmatprep.subr.mxu0 0.0
      %2035 = vmatpush1.msra.mxu0 0.0
      %2036 = vmatprep.subr.mxu0 0.0
      %2037 = vmatpush1.msra.mxu0 0.0
      %2038 = vmatprep.subr.mxu0 0.0
      %2039 = vmatpush1.msra.mxu0 0.0
      %2040 = vmatprep.subr.mxu0 0.0
      %2041 = vmatpush1.msra.mxu0 0.0
      %2042 = vmatprep.subr.mxu0 0.0
      %2043 = vmatpush1.msra.mxu0 0.0
      %2044 = vmatprep.subr.mxu0 0.0
      %2045 = vmatpush1.msra.mxu0 0.0
      %2046 = vmatprep.subr.mxu0 0.0
      %2047 = vmatpush1.msra.mxu0 0.0
      %2048 = vmatprep.subr.mxu0 0.0
      %2049 = vmatpush1.msra.mxu0 0.0
      %2050 = vmatprep.subr.mxu0 0.0
      %2051 = vmatpush1.msra.mxu0 0.0
      %2052 = vmatprep.subr.mxu0 0.0
      %2053 = vmatpush1.msra.mxu0 0.0
      %2054 = vmatprep.subr.mxu0 0.0
      %2055 = vmatpush1.msra.mxu0 0.0
      %2056 = vmatprep.subr.mxu0 0.0
      %2057 = vmatpush1.msra.mxu0 0.0
      %2058 = vmatprep.subr.mxu0 0.0
      %2059 = vmatpush1.msra.mxu0 0.0
      %2060 = vmatprep.mubr.f32.mxu0 0.0
      %2061 = vmatmul.mubr.f32.gmra.mrb[0].mxu0 %v1991
      %v2062 = vpop.f32.mrb[0].mxu0
      %v2063 = vadd.f32 0.0, %v2062
      %v2064 = vpop.f32.mrb[0].mxu0
      %2065 = vmatprep.mubr.f32.mxu0 0.0
      %2066 = vmatmul.mubr.f32.gmra.mrb[0].mxu0 %v1994
      %v2067 = vpop.f32.mrb[0].mxu0
      %v2068 = vadd.f32 0.0, %v2067
      %v2069 = vpop.f32.mrb[0].mxu0
      %2070 = vdwg.mxu0
      %v2071 = vadd.f32 %v1986, %v2063
      %v2072 = vadd.f32 %v1987, %v2068
      %v2073 = vtanh.pop %v2071
      %v2074 = vtanh.pop %v2072
      %v2075 = vmul.f32 %v1959, %v1861
      %v2076 = vmul.f32 %v1961, %v1862
      %v2077 = vsub.f32 1.0, %v1959
      %v2078 = vsub.f32 1.0, %v1961
      %v2079 = vmul.f32 %v2077, %v2073
      %v2080 = vmul.f32 %v2078, %v2074
      %v2081 = vadd.f32 %v2075, %v2079
      %v2082 = vadd.f32 %v2076, %v2080
      %2083 = vst.msk [vmem:[#allocation2 + $0x70] sm:$0xff] %vm327, %v2081
      %2084 = vst.msk [vmem:[#allocation2 + $0x78] sm:$0xff] %vm327, %v2082
      %v2085 = vld [vmem:[#allocation2] sm:$0xff]
      %v2086 = vld [vmem:[#allocation2 + $0x8] sm:$0xff]
      %v2087 = vld [vmem:[#allocation2 + $0x10] sm:$0xff]
      %v2088 = vld [vmem:[#allocation2 + $0x18] sm:$0xff]
      %v2089 = vld [vmem:[#allocation2 + $0x20] sm:$0xff]
      %v2090 = vld [vmem:[#allocation2 + $0x28] sm:$0xff]
      %v2091 = vld [vmem:[#allocation2 + $0x30] sm:$0xff]
      %v2092 = vld [vmem:[#allocation2 + $0x38] sm:$0xff]
      %v2093 = vld [vmem:[#allocation2 + $0x40] sm:$0xff]
      %v2094 = vld [vmem:[#allocation2 + $0x48] sm:$0xff]
      %v2095 = vld [vmem:[#allocation2 + $0x50] sm:$0xff]
      %v2096 = vld [vmem:[#allocation2 + $0x58] sm:$0xff]
      %v2097 = vld [vmem:[#allocation2 + $0x60] sm:$0xff]
      %v2098 = vld [vmem:[#allocation2 + $0x68] sm:$0xff]
      %v2099 = vld [vmem:[#allocation2 + $0x70] sm:$0xff]
      %v2100 = vld [vmem:[#allocation2 + $0x78] sm:$0xff]
      %v2101 = vmax.f32 %v2085, 0.0
      %v2102 = vmax.f32 %v2086, 0.0
      %v2103 = vmax.f32 %v2087, 0.0
      %v2104 = vmax.f32 %v2088, 0.0
      %v2105 = vmax.f32 %v2089, 0.0
      %v2106 = vmax.f32 %v2090, 0.0
      %v2107 = vmax.f32 %v2091, 0.0
      %v2108 = vmax.f32 %v2092, 0.0
      %v2109 = vmax.f32 %v2093, 0.0
      %v2110 = vmax.f32 %v2094, 0.0
      %v2111 = vmax.f32 %v2095, 0.0
      %v2112 = vmax.f32 %v2096, 0.0
      %v2113 = vmax.f32 %v2097, 0.0
      %v2114 = vmax.f32 %v2098, 0.0
      %v2115 = vmax.f32 %v2099, 0.0
      %v2116 = vmax.f32 %v2100, 0.0
      %v2117 = vld [vmem:[%s5] sm:$0xff]
      %v2118 = vld [vmem:[%s5 + $0x8] sm:$0xff]
      %v2119 = vld [vmem:[%s5 + $0x10] sm:$0xff]
      %v2120 = vld [vmem:[%s5 + $0x18] sm:$0xff]
      %v2121 = vld [vmem:[%s6] sm:$0x1]
      %v2123 = vlaneseq
      %v2124 = vshrl.u32 %v2123, 7
      %v2125 = vsub.s32 0, %v2124
      %v2126 = vrot.slane %v2121, %v2125
      %v2129 = vsel %vm327, %v2101, 0
      %v2132 = vsel %vm327, %v2102, 0
      %v2135 = vsel %vm327, %v2103, 0
      %v2138 = vsel %vm327, %v2104, 0
      %v2141 = vsel %vm327, %v2105, 0
      %v2144 = vsel %vm327, %v2106, 0
      %v2147 = vsel %vm327, %v2107, 0
      %v2150 = vsel %vm327, %v2108, 0
      %v2153 = vsel %vm327, %v2109, 0
      %v2156 = vsel %vm327, %v2110, 0
      %v2159 = vsel %vm327, %v2111, 0
      %v2162 = vsel %vm327, %v2112, 0
      %v2165 = vsel %vm327, %v2113, 0
      %v2168 = vsel %vm327, %v2114, 0
      %v2171 = vsel %vm327, %v2115, 0
      %v2174 = vsel %vm327, %v2116, 0
      %2176 = vmatprep.subr.mxu0 0.0
      %2177 = vmatpush1.msra.mxu0 %v2117
      %2178 = vmatprep.subr.mxu0 0.0
      %2179 = vmatpush1.msra.mxu0 %v2118
      %2180 = vmatprep.subr.mxu0 0.0
      %2181 = vmatpush1.msra.mxu0 %v2119
      %2182 = vmatprep.subr.mxu0 0.0
      %2183 = vmatpush1.msra.mxu0 %v2120
      %2184 = vmatprep.subr.mxu0 0.0
      %2185 = vmatpush1.msra.mxu0 0.0
      %2186 = vmatprep.subr.mxu0 0.0
      %2187 = vmatpush1.msra.mxu0 0.0
      %2188 = vmatprep.subr.mxu0 0.0
      %2189 = vmatpush1.msra.mxu0 0.0
      %2190 = vmatprep.subr.mxu0 0.0
      %2191 = vmatpush1.msra.mxu0 0.0
      %2192 = vmatprep.subr.mxu0 0.0
      %2193 = vmatpush1.msra.mxu0 0.0
      %2194 = vmatprep.subr.mxu0 0.0
      %2195 = vmatpush1.msra.mxu0 0.0
      %2196 = vmatprep.subr.mxu0 0.0
      %2197 = vmatpush1.msra.mxu0 0.0
      %2198 = vmatprep.subr.mxu0 0.0
      %2199 = vmatpush1.msra.mxu0 0.0
      %2200 = vmatprep.subr.mxu0 0.0
      %2201 = vmatpush1.msra.mxu0 0.0
      %2202 = vmatprep.subr.mxu0 0.0
      %2203 = vmatpush1.msra.mxu0 0.0
      %2204 = vmatprep.subr.mxu0 0.0
      %2205 = vmatpush1.msra.mxu0 0.0
      %2206 = vmatprep.subr.mxu0 0.0
      %2207 = vmatpush1.msra.mxu0 0.0
      %2208 = vmatprep.subr.mxu0 0.0
      %2209 = vmatpush1.msra.mxu0 0.0
      %2210 = vmatprep.subr.mxu0 0.0
      %2211 = vmatpush1.msra.mxu0 0.0
      %2212 = vmatprep.subr.mxu0 0.0
      %2213 = vmatpush1.msra.mxu0 0.0
      %2214 = vmatprep.subr.mxu0 0.0
      %2215 = vmatpush1.msra.mxu0 0.0
      %2216 = vmatprep.subr.mxu0 0.0
      %2217 = vmatpush1.msra.mxu0 0.0
      %2218 = vmatprep.subr.mxu0 0.0
      %2219 = vmatpush1.msra.mxu0 0.0
      %2220 = vmatprep.subr.mxu0 0.0
      %2221 = vmatpush1.msra.mxu0 0.0
      %2222 = vmatprep.subr.mxu0 0.0
      %2223 = vmatpush1.msra.mxu0 0.0
      %2224 = vmatprep.subr.mxu0 0.0
      %2225 = vmatpush1.msra.mxu0 0.0
      %2226 = vmatprep.subr.mxu0 0.0
      %2227 = vmatpush1.msra.mxu0 0.0
      %2228 = vmatprep.subr.mxu0 0.0
      %2229 = vmatpush1.msra.mxu0 0.0
      %2230 = vmatprep.subr.mxu0 0.0
      %2231 = vmatpush1.msra.mxu0 0.0
      %2232 = vmatprep.subr.mxu0 0.0
      %2233 = vmatpush1.msra.mxu0 0.0
      %2234 = vmatprep.subr.mxu0 0.0
      %2235 = vmatpush1.msra.mxu0 0.0
      %2236 = vmatprep.subr.mxu0 0.0
      %2237 = vmatpush1.msra.mxu0 0.0
      %2238 = vmatprep.subr.mxu0 0.0
      %2239 = vmatpush1.msra.mxu0 0.0
      %2240 = vmatprep.mubr.f32.mxu0 0.0
      %2241 = vmatmul.mubr.f32.gmra.mrb[0].mxu0 %v2129
      %v2242 = vpop.f32.mrb[0].mxu0
      %v2243 = vadd.f32 %v2126, %v2242
      %v2244 = vpop.f32.mrb[0].mxu0
      %2245 = vmatprep.mubr.f32.mxu0 0.0
      %2246 = vmatmul.mubr.f32.gmra.mrb[0].mxu0 %v2132
      %v2247 = vpop.f32.mrb[0].mxu0
      %v2248 = vadd.f32 %v2126, %v2247
      %v2249 = vpop.f32.mrb[0].mxu0
      %2250 = vmatprep.mubr.f32.mxu0 0.0
      %2251 = vmatmul.mubr.f32.gmra.mrb[0].mxu0 %v2135
      %v2252 = vpop.f32.mrb[0].mxu0
      %v2253 = vadd.f32 %v2126, %v2252
      %v2254 = vpop.f32.mrb[0].mxu0
      %2255 = vmatprep.mubr.f32.mxu0 0.0
      %2256 = vmatmul.mubr.f32.gmra.mrb[0].mxu0 %v2138
      %v2257 = vpop.f32.mrb[0].mxu0
      %v2258 = vadd.f32 %v2126, %v2257
      %v2259 = vpop.f32.mrb[0].mxu0
      %2260 = vmatprep.mubr.f32.mxu0 0.0
      %2261 = vmatmul.mubr.f32.gmra.mrb[0].mxu0 %v2141
      %v2262 = vpop.f32.mrb[0].mxu0
      %v2263 = vadd.f32 %v2126, %v2262
      %v2264 = vpop.f32.mrb[0].mxu0
      %2265 = vmatprep.mubr.f32.mxu0 0.0
      %2266 = vmatmul.mubr.f32.gmra.mrb[0].mxu0 %v2144
      %v2267 = vpop.f32.mrb[0].mxu0
      %v2268 = vadd.f32 %v2126, %v2267
      %v2269 = vpop.f32.mrb[0].mxu0
      %2270 = vmatprep.mubr.f32.mxu0 0.0
      %2271 = vmatmul.mubr.f32.gmra.mrb[0].mxu0 %v2147
      %v2272 = vpop.f32.mrb[0].mxu0
      %v2273 = vadd.f32 %v2126, %v2272
      %v2274 = vpop.f32.mrb[0].mxu0
      %2275 = vmatprep.mubr.f32.mxu0 0.0
      %2276 = vmatmul.mubr.f32.gmra.mrb[0].mxu0 %v2150
      %v2277 = vpop.f32.mrb[0].mxu0
      %v2278 = vadd.f32 %v2126, %v2277
      %v2279 = vpop.f32.mrb[0].mxu0
      %2280 = vmatprep.mubr.f32.mxu0 0.0
      %2281 = vmatmul.mubr.f32.gmra.mrb[0].mxu0 %v2153
      %v2282 = vpop.f32.mrb[0].mxu0
      %v2283 = vadd.f32 %v2126, %v2282
      %v2284 = vpop.f32.mrb[0].mxu0
      %2285 = vmatprep.mubr.f32.mxu0 0.0
      %2286 = vmatmul.mubr.f32.gmra.mrb[0].mxu0 %v2156
      %v2287 = vpop.f32.mrb[0].mxu0
      %v2288 = vadd.f32 %v2126, %v2287
      %v2289 = vpop.f32.mrb[0].mxu0
      %2290 = vmatprep.mubr.f32.mxu0 0.0
      %2291 = vmatmul.mubr.f32.gmra.mrb[0].mxu0 %v2159
      %v2292 = vpop.f32.mrb[0].mxu0
      %v2293 = vadd.f32 %v2126, %v2292
      %v2294 = vpop.f32.mrb[0].mxu0
      %2295 = vmatprep.mubr.f32.mxu0 0.0
      %2296 = vmatmul.mubr.f32.gmra.mrb[0].mxu0 %v2162
      %v2297 = vpop.f32.mrb[0].mxu0
      %v2298 = vadd.f32 %v2126, %v2297
      %v2299 = vpop.f32.mrb[0].mxu0
      %2300 = vmatprep.mubr.f32.mxu0 0.0
      %2301 = vmatmul.mubr.f32.gmra.mrb[0].mxu0 %v2165
      %v2302 = vpop.f32.mrb[0].mxu0
      %v2303 = vadd.f32 %v2126, %v2302
      %v2304 = vpop.f32.mrb[0].mxu0
      %2305 = vmatprep.mubr.f32.mxu0 0.0
      %2306 = vmatmul.mubr.f32.gmra.mrb[0].mxu0 %v2168
      %v2307 = vpop.f32.mrb[0].mxu0
      %v2308 = vadd.f32 %v2126, %v2307
      %v2309 = vpop.f32.mrb[0].mxu0
      %2310 = vmatprep.mubr.f32.mxu0 0.0
      %2311 = vmatmul.mubr.f32.gmra.mrb[0].mxu0 %v2171
      %v2312 = vpop.f32.mrb[0].mxu0
      %v2313 = vadd.f32 %v2126, %v2312
      %v2314 = vpop.f32.mrb[0].mxu0
      %2315 = vmatprep.mubr.f32.mxu0 0.0
      %2316 = vmatmul.mubr.f32.gmra.mrb[0].mxu0 %v2174
      %v2317 = vpop.f32.mrb[0].mxu0
      %v2318 = vadd.f32 %v2126, %v2317
      %v2319 = vpop.f32.mrb[0].mxu0
      %2320 = vdwg.mxu0
      %vm2321 = vcmask 15360
      %2322 = vst.msk [vmem:[%s318] sm:$0xff] %vm2321, %v2243
      %2323 = vst.msk [vmem:[%s318 + $0x8] sm:$0xff] %vm2321, %v2248
      %2324 = vst.msk [vmem:[%s318 + $0x10] sm:$0xff] %vm2321, %v2253
      %2325 = vst.msk [vmem:[%s318 + $0x18] sm:$0xff] %vm2321, %v2258
      %2326 = vst.msk [vmem:[%s318 + $0x20] sm:$0xff] %vm2321, %v2263
      %2327 = vst.msk [vmem:[%s318 + $0x28] sm:$0xff] %vm2321, %v2268
      %2328 = vst.msk [vmem:[%s318 + $0x30] sm:$0xff] %vm2321, %v2273
      %2329 = vst.msk [vmem:[%s318 + $0x38] sm:$0xff] %vm2321, %v2278
      %2330 = vst.msk [vmem:[%s318 + $0x40] sm:$0xff] %vm2321, %v2283
      %2331 = vst.msk [vmem:[%s318 + $0x48] sm:$0xff] %vm2321, %v2288
      %2332 = vst.msk [vmem:[%s318 + $0x50] sm:$0xff] %vm2321, %v2293
      %2333 = vst.msk [vmem:[%s318 + $0x58] sm:$0xff] %vm2321, %v2298
      %2334 = vst.msk [vmem:[%s318 + $0x60] sm:$0xff] %vm2321, %v2303
      %2335 = vst.msk [vmem:[%s318 + $0x68] sm:$0xff] %vm2321, %v2308
      %2336 = vst.msk [vmem:[%s318 + $0x70] sm:$0xff] %vm2321, %v2313
      %2337 = vst.msk [vmem:[%s318 + $0x78] sm:$0xff] %vm2321, %v2318
      %p2338 = scmp.lt.s32.totalorder %s18, 1
      %s2339 = scalar_select %p2338, %s18, 1
      %s2340 = smul.addr %s2339, 16
      %s2341 = smul.addr %s2340, 8
      %s2342 = scalar_lea.vmem %s7, %s2341
      // Predicated region
      $region49: #{batched_tgcn_forward.1} parent=47 // pred_check
        %p2343 = pneg %p198
      $region50: #{batched_tgcn_forward.1} parent=47 // pred_check_branch
        %2345 = sbr.rel (%p2343) target = $region52
      $region51: #{batched_tgcn_forward.1} parent=47 // pred_region
        _
      $region52: #{batched_tgcn_forward.1} parent=47 // pred_fallthru
        _
    $region48: #{batched_tgcn_forward.1} parent=5 // pred_fallthru
      _
    %p2346 = scmp.le.s32.totalorder 2, %s13
    // Predicated region
    $region53: #{batched_tgcn_forward.1} parent=5 // pred_check
      %p2347 = pneg %p2346
    $region54: #{batched_tgcn_forward.1} parent=5 // pred_check_branch
      %2349 = sbr.rel (%p2347) target = $region56
    $region55: #{batched_tgcn_forward.1} parent=5 // pred_region
      %s2350 = ssub.s32 %s13, 2
      // Predicated region
      $region57: #{batched_tgcn_forward.1} parent=55 // pred_check
        %p2351 = pneg %p204
      $region58: #{batched_tgcn_forward.1} parent=55 // pred_check_branch
        %2353 = sbr.rel (%p2351) target = $region60
      $region59: #{batched_tgcn_forward.1} parent=55 // pred_region
        %p2354 = scmp.lt.s32.totalorder %s19, 1
        %s2355 = scalar_select %p2354, %s19, 1
        %s2356 = smul.addr %s2355, 16
        %s2357 = smul.addr %s2356, 8
        %s2358 = scalar_lea.vmem %s7, %s2357
      $region60: #{batched_tgcn_forward.1} parent=55 // pred_fallthru
        _
    $region56: #{batched_tgcn_forward.1} parent=5 // pred_fallthru
      _
  $region6: #{batched_tgcn_forward.1} parent=0 // loop_footer
    %s17 = sadd.s32 1, %s13
  $region7: #{batched_tgcn_forward.1} parent=0 // loop_footer_branch
    %12 = sbr.rel target = $region3
  $region8: #{batched_tgcn_forward.1} parent=0 // loop_exit
    _

</llo_original>
